<compile_context>
chip_gen: v7x
topology: tpu7x:2x2x1
jax: 0.10.0
libtpu: 0.0.40
codegen_flags: <defaults>
</compile_context>

<pallas_src>
import functools

import jax
import jax.numpy as jnp
import numpy as np
from jax.experimental import pallas as pl
from jax.experimental.pallas import tpu as pltpu


def _round_up(x, m):
    return (x + m - 1) // m * m


def make_seq_lstm_kernel(nlayers: int, hidden: int, T: int, Bp: int):
    H = hidden

    def kernel(*refs):
        # refs = (x2d, wih0, whh0, b0, [wcat_l, b_l]*(nlayers-1), wlin, blin, out)
        x_ref = refs[0]                                   # (T*Bp, Din)  bf16
        wih0_ref, whh0_ref, b0_ref = refs[1], refs[2], refs[3]
        upper = refs[4:4 + 2 * (nlayers - 1)]
        wlin_ref = refs[4 + 2 * (nlayers - 1)]            # (H, Dp)  bf16
        blin_ref = refs[5 + 2 * (nlayers - 1)]            # (1, Dp)  f32
        out_ref = refs[6 + 2 * (nlayers - 1)]             # (T*Bp, Dp) bf16
        Dp = out_ref.shape[1]

        # ---- Non-recurrent prologue (off the serial path) -------------------
        # Layer-0 input projection for ALL timesteps in one MXU push, bias folded in.
        xproj0 = (jnp.dot(x_ref[...], wih0_ref[...],
                          preferred_element_type=jnp.float32)
                  + jnp.broadcast_to(b0_ref[...], (T * Bp, 4 * H)))     # (T*Bp,4H) f32

        # Hoist remaining weights / biases once (reused by every unrolled step).
        whh0 = whh0_ref[...]                                            # (H, 4H) bf16
        wcat = [upper[2 * i][...] for i in range(nlayers - 1)]          # (2H,4H) bf16
        bias = [jnp.broadcast_to(upper[2 * i + 1][...], (Bp, 4 * H))
                for i in range(nlayers - 1)]                            # (Bp,4H) f32

        # Recurrent state kept as traced values (vregs), zero-initialised.
        cs = [jnp.zeros((Bp, H), jnp.float32) for _ in range(nlayers)]
        h_bf = [jnp.zeros((Bp, H), jnp.bfloat16) for _ in range(nlayers)]

        # ---- Recurrence: fully unrolled static time loop ---------------------
        outs = []
        for t in range(T):
            h_new = None
            for l in range(nlayers):
                if l == 0:
                    gates = (xproj0[t * Bp:(t + 1) * Bp, :]
                             + jnp.dot(h_bf[0], whh0,
                                       preferred_element_type=jnp.float32))
                else:
                    # Fused [input ; hidden] projection: one K=2H dot.
                    xin = jnp.concatenate([h_bf[l - 1], h_bf[l]], axis=1)   # (Bp,2H)
                    gates = (jnp.dot(xin, wcat[l - 1],
                                     preferred_element_type=jnp.float32)
                             + bias[l - 1])

                # One full-width sigmoid push; g recovered via tanh(x)=2*sigmoid(2x)-1
                # (the 2x is pre-folded into the g-columns of the weights/bias).
                sig = jax.nn.sigmoid(gates)
                i_g = sig[:, 0 * H:1 * H]
                f_g = sig[:, 1 * H:2 * H]
                g_g = 2.0 * sig[:, 2 * H:3 * H] - 1.0
                o_g = sig[:, 3 * H:4 * H]

                c_new = f_g * cs[l] + i_g * g_g
                h_new = o_g * jnp.tanh(c_new)
                cs[l] = c_new
                h_bf[l] = h_new.astype(jnp.bfloat16)

            # relu + cast off the critical path; kept as traced vregs (no VMEM store).
            outs.append(jnp.maximum(h_new, 0.0).astype(jnp.bfloat16))

        # ---- Epilogue: output projection over the whole sequence ------------
        h_relu = jnp.concatenate(outs, axis=0)                           # (T*Bp, H) bf16
        out = (jnp.dot(h_relu, wlin_ref[...], preferred_element_type=jnp.float32)
               + jnp.broadcast_to(blin_ref[...], (T * Bp, Dp)))
        out_ref[...] = out.astype(out_ref.dtype)

    return kernel


def seq_lstm_forward(x_btd, params, *, nlayers, hidden):
    """x_btd: (B, T, Din) float32 (PyTorch batch_first convention)."""
    B, T, Din = x_btd.shape
    H = hidden
    wlin = params["wlin"]          # (H, Dout) f32
    blin = params["blin"]          # (1, Dout) f32
    Dout = wlin.shape[1]

    # vreg-friendly padding: batch -> multiple of 8 sublanes,
    # output columns -> multiple of 128 lanes (unmasked stores).
    Bp = max(8, _round_up(B, 8))
    Dp = max(128, _round_up(Dout, 128))

    # time-major, batch-padded, flattened to a 2-D (T*Bp, Din) slab; bf16 for the MXU.
    x_tbd = jnp.transpose(x_btd, (1, 0, 2))                     # (T, B, Din)
    x_tbd = jnp.pad(x_tbd, ((0, 0), (0, Bp - B), (0, 0)))
    x2d = x_tbd.reshape(T * Bp, Din).astype(jnp.bfloat16)

    wlin_p = jnp.pad(wlin, ((0, 0), (0, Dp - Dout))).astype(jnp.bfloat16)
    blin_p = jnp.pad(blin, ((0, 0), (0, Dp - Dout)))            # f32

    def scale_g(w):
        # Pre-scale the g-gate column block (2H:3H) by 2 so the kernel can use
        # tanh(x) = 2*sigmoid(2x) - 1 with a single full-width sigmoid.
        return w.at[..., 2 * H:3 * H].multiply(2.0)

    layer_args = []
    layer_specs = []
    # Layer 0: separate W_ih (input projection hoisted over all T) and W_hh.
    wih0 = scale_g(params["wih0"]).astype(jnp.bfloat16)         # (Din, 4H)
    whh0 = scale_g(params["whh0"]).astype(jnp.bfloat16)         # (H, 4H)
    b0 = scale_g(params["b0"])                                  # (1, 4H) f32
    layer_args += [wih0, whh0, b0]
    layer_specs += [
        pl.BlockSpec(wih0.shape, lambda i: (0, 0)),
        pl.BlockSpec(whh0.shape, lambda i: (0, 0)),
        pl.BlockSpec(b0.shape, lambda i: (0, 0)),
    ]
    # Layers >= 1: fused [W_ih; W_hh] -> single (2H, 4H) weight (one K=2H dot/cell).
    for l in range(1, nlayers):
        wcat = jnp.concatenate([params[f"wih{l}"], params[f"whh{l}"]], axis=0)
        wcat = scale_g(wcat).astype(jnp.bfloat16)               # (2H, 4H)
        b = scale_g(params[f"b{l}"])                            # (1, 4H) f32
        layer_args += [wcat, b]
        layer_specs += [
            pl.BlockSpec(wcat.shape, lambda i: (0, 0)),
            pl.BlockSpec(b.shape, lambda i: (0, 0)),
        ]

    kernel = make_seq_lstm_kernel(nlayers, H, T, Bp)

    grid_spec = pltpu.PrefetchScalarGridSpec(
        num_scalar_prefetch=0,
        grid=(1,),   # whole sequence in a single invocation; time loop is in-kernel
        in_specs=[pl.BlockSpec((T * Bp, Din), lambda i: (0, 0))]
        + layer_specs
        + [
            pl.BlockSpec(wlin_p.shape, lambda i: (0, 0)),
            pl.BlockSpec(blin_p.shape, lambda i: (0, 0)),
        ],
        out_specs=pl.BlockSpec((T * Bp, Dp), lambda i: (0, 0)),
    )

    out2d = pl.pallas_call(
        kernel,
        out_shape=jax.ShapeDtypeStruct((T * Bp, Dp), jnp.bfloat16),
        grid_spec=grid_spec,
        compiler_params=pltpu.CompilerParams(
            dimension_semantics=("arbitrary",),
        ),
    )(x2d, *layer_args, wlin_p, blin_p)

    out = out2d.reshape(T, Bp, Dp)[:, :B, :Dout].astype(jnp.float32)
    return jnp.transpose(out, (1, 0, 2))            # back to (B, T, Dout)


def init_params(key, *, input_length, hidden, nlayers, out_dim):
    """Deterministic init mirroring PyTorch's U(-1/sqrt(H), 1/sqrt(H))."""
    params = {}
    k = 1.0 / np.sqrt(hidden)
    for l in range(nlayers):
        din_l = input_length if l == 0 else hidden
        key, k1, k2, k3, k4 = jax.random.split(key, 5)
        # stored pre-transposed: (din_l, 4H) and (H, 4H)
        params[f"wih{l}"] = jax.random.uniform(k1, (din_l, 4 * hidden), jnp.float32, -k, k)
        params[f"whh{l}"] = jax.random.uniform(k2, (hidden, 4 * hidden), jnp.float32, -k, k)
        b_ih = jax.random.uniform(k3, (4 * hidden,), jnp.float32, -k, k)
        b_hh = jax.random.uniform(k4, (4 * hidden,), jnp.float32, -k, k)
        params[f"b{l}"] = (b_ih + b_hh).reshape(1, 4 * hidden)
    key, k5, k6 = jax.random.split(key, 3)
    params["wlin"] = jax.random.uniform(k5, (hidden, out_dim), jnp.float32, -k, k)
    params["blin"] = jax.random.uniform(k6, (1, out_dim), jnp.float32, -k, k)
    return params


def seq_lstm_reference(x_btd, params, *, nlayers, hidden):
    """Pure-JAX f32 reference implementing the same math (for correctness check)."""
    B, T, _ = x_btd.shape
    H = hidden
    hs = [jnp.zeros((B, H), jnp.float32) for _ in range(nlayers)]
    cs = [jnp.zeros((B, H), jnp.float32) for _ in range(nlayers)]
    outs = []
    for t in range(T):
        inp = x_btd[:, t]
        for l in range(nlayers):
            gates = inp @ params[f"wih{l}"] + hs[l] @ params[f"whh{l}"] + params[f"b{l}"]
            i_g = jax.nn.sigmoid(gates[:, 0 * H:1 * H])
            f_g = jax.nn.sigmoid(gates[:, 1 * H:2 * H])
            g_g = jnp.tanh(gates[:, 2 * H:3 * H])
            o_g = jax.nn.sigmoid(gates[:, 3 * H:4 * H])
            cs[l] = f_g * cs[l] + i_g * g_g
            hs[l] = o_g * jnp.tanh(cs[l])
            inp = hs[l]
        outs.append(jnp.maximum(inp, 0.0) @ params["wlin"] + params["blin"])
    return jnp.stack(outs, axis=1)


if __name__ == "__main__":
    # Module hyperparameters (globals in the original file): input_length, seq_length, tgt_length
    input_length = 16   # feature size per time step
    seq_length = 8      # sequence length
    tgt_length = 8      # target length
    narchs = 1
    nhidden = 32
    nlayers = 2
    batch = 2
    out_dim = narchs * tgt_length

    key = jax.random.PRNGKey(0)
    key, kx, kp = jax.random.split(key, 3)
    x = jax.random.normal(kx, (batch, seq_length, input_length), jnp.float32)
    params = init_params(kp, input_length=input_length, hidden=nhidden,
                         nlayers=nlayers, out_dim=out_dim)

    fwd = functools.partial(seq_lstm_forward, nlayers=nlayers, hidden=nhidden)
    out = jax.block_until_ready(fwd(x, params))

    ref = seq_lstm_reference(x, params, nlayers=nlayers, hidden=nhidden)
    # bf16 MXU inputs + bf16 output slab (f32 accumulation / cell math) -> small drift
    # vs the pure-f32 reference.
    np.testing.assert_allclose(np.asarray(out), np.asarray(ref), rtol=2e-2, atol=2e-2)

    assert out.shape == (batch, seq_length, out_dim)
    print("KERNEL_OK")
</pallas_src>

<mosaic_0001>
module attributes {stable_mosaic.version = 11 : i64} {
  func.func @kernel(%arg0: i32, %arg1: memref<64x16xbf16, #tpu.memory_space<vmem>>, %arg2: memref<16x128xbf16, #tpu.memory_space<vmem>>, %arg3: memref<32x128xbf16, #tpu.memory_space<vmem>>, %arg4: memref<1x128xf32, #tpu.memory_space<vmem>>, %arg5: memref<64x128xbf16, #tpu.memory_space<vmem>>, %arg6: memref<1x128xf32, #tpu.memory_space<vmem>>, %arg7: memref<32x128xbf16, #tpu.memory_space<vmem>>, %arg8: memref<1x128xf32, #tpu.memory_space<vmem>>, %arg9: memref<64x128xbf16, #tpu.memory_space<vmem>>) attributes {dimension_semantics = [#tpu.dimension_semantics<arbitrary>], iteration_bounds = array<i64: 1>, scalar_prefetch = 0 : i64, scratch_operands = 0 : i64, tpu.core_type = #tpu.core_type<tc>, window_params = [{pipeline_mode = #tpu.pipeline_mode<synchronous>, transform_indices = @transform_0, window_bounds = array<i64: 64, 16>}, {pipeline_mode = #tpu.pipeline_mode<synchronous>, transform_indices = @transform_1, window_bounds = array<i64: 16, 128>}, {pipeline_mode = #tpu.pipeline_mode<synchronous>, transform_indices = @transform_2, window_bounds = array<i64: 32, 128>}, {pipeline_mode = #tpu.pipeline_mode<synchronous>, transform_indices = @transform_3, window_bounds = array<i64: 1, 128>}, {pipeline_mode = #tpu.pipeline_mode<synchronous>, transform_indices = @transform_4, window_bounds = array<i64: 64, 128>}, {pipeline_mode = #tpu.pipeline_mode<synchronous>, transform_indices = @transform_5, window_bounds = array<i64: 1, 128>}, {pipeline_mode = #tpu.pipeline_mode<synchronous>, transform_indices = @transform_6, window_bounds = array<i64: 32, 128>}, {pipeline_mode = #tpu.pipeline_mode<synchronous>, transform_indices = @transform_7, window_bounds = array<i64: 1, 128>}, {pipeline_mode = #tpu.pipeline_mode<synchronous>, transform_indices = @transform_8, window_bounds = array<i64: 64, 128>}]} {
    %c0 = arith.constant 0 : index
    %c0_0 = arith.constant 0 : index
    %0 = vector.load %arg1[%c0, %c0_0] : memref<64x16xbf16, #tpu.memory_space<vmem>>, vector<64x16xbf16>
    %c0_1 = arith.constant 0 : index
    %c0_2 = arith.constant 0 : index
    %1 = vector.load %arg2[%c0_1, %c0_2] : memref<16x128xbf16, #tpu.memory_space<vmem>>, vector<16x128xbf16>
    %cst = arith.constant dense<0.000000e+00> : vector<64x128xf32>
    %2 = tpu.matmul %0, %1, %cst {dimension_numbers = #tpu.dot_dimension_numbers<[1], [0], [0], [1], [0, 0, 1, 1], [], []>} : vector<64x16xbf16>, vector<16x128xbf16>, vector<64x128xf32> -> vector<64x128xf32>
    %c0_3 = arith.constant 0 : index
    %c0_4 = arith.constant 0 : index
    %3 = vector.load %arg4[%c0_3, %c0_4] : memref<1x128xf32, #tpu.memory_space<vmem>>, vector<1x128xf32>
    %4 = vector.shape_cast %3 : vector<1x128xf32> to vector<1x128xf32>
    %5 = vector.broadcast %4 : vector<1x128xf32> to vector<64x128xf32>
    %6 = arith.addf %2, %5 : vector<64x128xf32>
    %c0_5 = arith.constant 0 : index
    %c0_6 = arith.constant 0 : index
    %7 = vector.load %arg3[%c0_5, %c0_6] : memref<32x128xbf16, #tpu.memory_space<vmem>>, vector<32x128xbf16>
    %c0_7 = arith.constant 0 : index
    %c0_8 = arith.constant 0 : index
    %8 = vector.load %arg5[%c0_7, %c0_8] : memref<64x128xbf16, #tpu.memory_space<vmem>>, vector<64x128xbf16>
    %c0_9 = arith.constant 0 : index
    %c0_10 = arith.constant 0 : index
    %9 = vector.load %arg6[%c0_9, %c0_10] : memref<1x128xf32, #tpu.memory_space<vmem>>, vector<1x128xf32>
    %10 = vector.shape_cast %9 : vector<1x128xf32> to vector<1x128xf32>
    %11 = vector.broadcast %10 : vector<1x128xf32> to vector<8x128xf32>
    %cst_11 = arith.constant 0.000000e+00 : f32
    %12 = vector.broadcast %cst_11 : f32 to vector<8x32xf32>
    %cst_12 = arith.constant 0.000000e+00 : f32
    %13 = vector.broadcast %cst_12 : f32 to vector<8x32xf32>
    %cst_13 = arith.constant 0.000000e+00 : bf16
    %14 = vector.broadcast %cst_13 : bf16 to vector<8x32xbf16>
    %cst_14 = arith.constant 0.000000e+00 : bf16
    %15 = vector.broadcast %cst_14 : bf16 to vector<8x32xbf16>
    %16 = vector.extract_strided_slice %6 {offsets = [0, 0], sizes = [8, 128], strides = [1, 1]} : vector<64x128xf32> to vector<8x128xf32>
    %cst_15 = arith.constant dense<0.000000e+00> : vector<8x128xf32>
    %17 = tpu.matmul %14, %7, %cst_15 {dimension_numbers = #tpu.dot_dimension_numbers<[1], [0], [0], [1], [0, 0, 1, 1], [], []>} : vector<8x32xbf16>, vector<32x128xbf16>, vector<8x128xf32> -> vector<8x128xf32>
    %18 = arith.addf %16, %17 : vector<8x128xf32>
    %19 = arith.negf %18 : vector<8x128xf32>
    %20 = math.exp %19 : vector<8x128xf32>
    %cst_16 = arith.constant 1.000000e+00 : f32
    %21 = vector.broadcast %cst_16 : f32 to vector<8x128xf32>
    %22 = arith.addf %21, %20 : vector<8x128xf32>
    %23 = arith.divf %21, %22 : vector<8x128xf32>
    %24 = vector.extract_strided_slice %23 {offsets = [0, 0], sizes = [8, 32], strides = [1, 1]} : vector<8x128xf32> to vector<8x32xf32>
    %25 = vector.extract_strided_slice %23 {offsets = [0, 32], sizes = [8, 32], strides = [1, 1]} : vector<8x128xf32> to vector<8x32xf32>
    %26 = vector.extract_strided_slice %23 {offsets = [0, 64], sizes = [8, 32], strides = [1, 1]} : vector<8x128xf32> to vector<8x32xf32>
    %cst_17 = arith.constant 2.000000e+00 : f32
    %27 = vector.broadcast %cst_17 : f32 to vector<8x32xf32>
    %28 = arith.mulf %27, %26 : vector<8x32xf32>
    %cst_18 = arith.constant 1.000000e+00 : f32
    %29 = vector.broadcast %cst_18 : f32 to vector<8x32xf32>
    %30 = arith.subf %28, %29 : vector<8x32xf32>
    %31 = vector.extract_strided_slice %23 {offsets = [0, 96], sizes = [8, 32], strides = [1, 1]} : vector<8x128xf32> to vector<8x32xf32>
    %32 = arith.mulf %25, %12 : vector<8x32xf32>
    %33 = arith.mulf %24, %30 : vector<8x32xf32>
    %34 = arith.addf %32, %33 : vector<8x32xf32>
    %35 = math.tanh %34 : vector<8x32xf32>
    %36 = arith.mulf %31, %35 : vector<8x32xf32>
    %37 = arith.truncf %36 : vector<8x32xf32> to vector<8x32xbf16>
    %38 = tpu.concatenate %37, %15 in 1 : vector<8x32xbf16>, vector<8x32xbf16> -> vector<8x64xbf16>
    %cst_19 = arith.constant dense<0.000000e+00> : vector<8x128xf32>
    %39 = tpu.matmul %38, %8, %cst_19 {dimension_numbers = #tpu.dot_dimension_numbers<[1], [0], [0], [1], [0, 0, 1, 1], [], []>} : vector<8x64xbf16>, vector<64x128xbf16>, vector<8x128xf32> -> vector<8x128xf32>
    %40 = arith.addf %39, %11 : vector<8x128xf32>
    %41 = arith.negf %40 : vector<8x128xf32>
    %42 = math.exp %41 : vector<8x128xf32>
    %cst_20 = arith.constant 1.000000e+00 : f32
    %43 = vector.broadcast %cst_20 : f32 to vector<8x128xf32>
    %44 = arith.addf %43, %42 : vector<8x128xf32>
    %45 = arith.divf %43, %44 : vector<8x128xf32>
    %46 = vector.extract_strided_slice %45 {offsets = [0, 0], sizes = [8, 32], strides = [1, 1]} : vector<8x128xf32> to vector<8x32xf32>
    %47 = vector.extract_strided_slice %45 {offsets = [0, 32], sizes = [8, 32], strides = [1, 1]} : vector<8x128xf32> to vector<8x32xf32>
    %48 = vector.extract_strided_slice %45 {offsets = [0, 64], sizes = [8, 32], strides = [1, 1]} : vector<8x128xf32> to vector<8x32xf32>
    %cst_21 = arith.constant 2.000000e+00 : f32
    %49 = vector.broadcast %cst_21 : f32 to vector<8x32xf32>
    %50 = arith.mulf %49, %48 : vector<8x32xf32>
    %cst_22 = arith.constant 1.000000e+00 : f32
    %51 = vector.broadcast %cst_22 : f32 to vector<8x32xf32>
    %52 = arith.subf %50, %51 : vector<8x32xf32>
    %53 = vector.extract_strided_slice %45 {offsets = [0, 96], sizes = [8, 32], strides = [1, 1]} : vector<8x128xf32> to vector<8x32xf32>
    %54 = arith.mulf %47, %13 : vector<8x32xf32>
    %55 = arith.mulf %46, %52 : vector<8x32xf32>
    %56 = arith.addf %54, %55 : vector<8x32xf32>
    %57 = math.tanh %56 : vector<8x32xf32>
    %58 = arith.mulf %53, %57 : vector<8x32xf32>
    %59 = arith.truncf %58 : vector<8x32xf32> to vector<8x32xbf16>
    %cst_23 = arith.constant 0.000000e+00 : f32
    %60 = vector.broadcast %cst_23 : f32 to vector<8x32xf32>
    %61 = arith.maximumf %58, %60 : vector<8x32xf32>
    %62 = arith.truncf %61 : vector<8x32xf32> to vector<8x32xbf16>
    %63 = vector.extract_strided_slice %6 {offsets = [8, 0], sizes = [8, 128], strides = [1, 1]} : vector<64x128xf32> to vector<8x128xf32>
    %cst_24 = arith.constant dense<0.000000e+00> : vector<8x128xf32>
    %64 = tpu.matmul %37, %7, %cst_24 {dimension_numbers = #tpu.dot_dimension_numbers<[1], [0], [0], [1], [0, 0, 1, 1], [], []>} : vector<8x32xbf16>, vector<32x128xbf16>, vector<8x128xf32> -> vector<8x128xf32>
    %65 = arith.addf %63, %64 : vector<8x128xf32>
    %66 = arith.negf %65 : vector<8x128xf32>
    %67 = math.exp %66 : vector<8x128xf32>
    %cst_25 = arith.constant 1.000000e+00 : f32
    %68 = vector.broadcast %cst_25 : f32 to vector<8x128xf32>
    %69 = arith.addf %68, %67 : vector<8x128xf32>
    %70 = arith.divf %68, %69 : vector<8x128xf32>
    %71 = vector.extract_strided_slice %70 {offsets = [0, 0], sizes = [8, 32], strides = [1, 1]} : vector<8x128xf32> to vector<8x32xf32>
    %72 = vector.extract_strided_slice %70 {offsets = [0, 32], sizes = [8, 32], strides = [1, 1]} : vector<8x128xf32> to vector<8x32xf32>
    %73 = vector.extract_strided_slice %70 {offsets = [0, 64], sizes = [8, 32], strides = [1, 1]} : vector<8x128xf32> to vector<8x32xf32>
    %cst_26 = arith.constant 2.000000e+00 : f32
    %74 = vector.broadcast %cst_26 : f32 to vector<8x32xf32>
    %75 = arith.mulf %74, %73 : vector<8x32xf32>
    %cst_27 = arith.constant 1.000000e+00 : f32
    %76 = vector.broadcast %cst_27 : f32 to vector<8x32xf32>
    %77 = arith.subf %75, %76 : vector<8x32xf32>
    %78 = vector.extract_strided_slice %70 {offsets = [0, 96], sizes = [8, 32], strides = [1, 1]} : vector<8x128xf32> to vector<8x32xf32>
    %79 = arith.mulf %72, %34 : vector<8x32xf32>
    %80 = arith.mulf %71, %77 : vector<8x32xf32>
    %81 = arith.addf %79, %80 : vector<8x32xf32>
    %82 = math.tanh %81 : vector<8x32xf32>
    %83 = arith.mulf %78, %82 : vector<8x32xf32>
    %84 = arith.truncf %83 : vector<8x32xf32> to vector<8x32xbf16>
    %85 = tpu.concatenate %84, %59 in 1 : vector<8x32xbf16>, vector<8x32xbf16> -> vector<8x64xbf16>
    %cst_28 = arith.constant dense<0.000000e+00> : vector<8x128xf32>
    %86 = tpu.matmul %85, %8, %cst_28 {dimension_numbers = #tpu.dot_dimension_numbers<[1], [0], [0], [1], [0, 0, 1, 1], [], []>} : vector<8x64xbf16>, vector<64x128xbf16>, vector<8x128xf32> -> vector<8x128xf32>
    %87 = arith.addf %86, %11 : vector<8x128xf32>
    %88 = arith.negf %87 : vector<8x128xf32>
    %89 = math.exp %88 : vector<8x128xf32>
    %cst_29 = arith.constant 1.000000e+00 : f32
    %90 = vector.broadcast %cst_29 : f32 to vector<8x128xf32>
    %91 = arith.addf %90, %89 : vector<8x128xf32>
    %92 = arith.divf %90, %91 : vector<8x128xf32>
    %93 = vector.extract_strided_slice %92 {offsets = [0, 0], sizes = [8, 32], strides = [1, 1]} : vector<8x128xf32> to vector<8x32xf32>
    %94 = vector.extract_strided_slice %92 {offsets = [0, 32], sizes = [8, 32], strides = [1, 1]} : vector<8x128xf32> to vector<8x32xf32>
    %95 = vector.extract_strided_slice %92 {offsets = [0, 64], sizes = [8, 32], strides = [1, 1]} : vector<8x128xf32> to vector<8x32xf32>
    %cst_30 = arith.constant 2.000000e+00 : f32
    %96 = vector.broadcast %cst_30 : f32 to vector<8x32xf32>
    %97 = arith.mulf %96, %95 : vector<8x32xf32>
    %cst_31 = arith.constant 1.000000e+00 : f32
    %98 = vector.broadcast %cst_31 : f32 to vector<8x32xf32>
    %99 = arith.subf %97, %98 : vector<8x32xf32>
    %100 = vector.extract_strided_slice %92 {offsets = [0, 96], sizes = [8, 32], strides = [1, 1]} : vector<8x128xf32> to vector<8x32xf32>
    %101 = arith.mulf %94, %56 : vector<8x32xf32>
    %102 = arith.mulf %93, %99 : vector<8x32xf32>
    %103 = arith.addf %101, %102 : vector<8x32xf32>
    %104 = math.tanh %103 : vector<8x32xf32>
    %105 = arith.mulf %100, %104 : vector<8x32xf32>
    %106 = arith.truncf %105 : vector<8x32xf32> to vector<8x32xbf16>
    %cst_32 = arith.constant 0.000000e+00 : f32
    %107 = vector.broadcast %cst_32 : f32 to vector<8x32xf32>
    %108 = arith.maximumf %105, %107 : vector<8x32xf32>
    %109 = arith.truncf %108 : vector<8x32xf32> to vector<8x32xbf16>
    %110 = vector.extract_strided_slice %6 {offsets = [16, 0], sizes = [8, 128], strides = [1, 1]} : vector<64x128xf32> to vector<8x128xf32>
    %cst_33 = arith.constant dense<0.000000e+00> : vector<8x128xf32>
    %111 = tpu.matmul %84, %7, %cst_33 {dimension_numbers = #tpu.dot_dimension_numbers<[1], [0], [0], [1], [0, 0, 1, 1], [], []>} : vector<8x32xbf16>, vector<32x128xbf16>, vector<8x128xf32> -> vector<8x128xf32>
    %112 = arith.addf %110, %111 : vector<8x128xf32>
    %113 = arith.negf %112 : vector<8x128xf32>
    %114 = math.exp %113 : vector<8x128xf32>
    %cst_34 = arith.constant 1.000000e+00 : f32
    %115 = vector.broadcast %cst_34 : f32 to vector<8x128xf32>
    %116 = arith.addf %115, %114 : vector<8x128xf32>
    %117 = arith.divf %115, %116 : vector<8x128xf32>
    %118 = vector.extract_strided_slice %117 {offsets = [0, 0], sizes = [8, 32], strides = [1, 1]} : vector<8x128xf32> to vector<8x32xf32>
    %119 = vector.extract_strided_slice %117 {offsets = [0, 32], sizes = [8, 32], strides = [1, 1]} : vector<8x128xf32> to vector<8x32xf32>
    %120 = vector.extract_strided_slice %117 {offsets = [0, 64], sizes = [8, 32], strides = [1, 1]} : vector<8x128xf32> to vector<8x32xf32>
    %cst_35 = arith.constant 2.000000e+00 : f32
    %121 = vector.broadcast %cst_35 : f32 to vector<8x32xf32>
    %122 = arith.mulf %121, %120 : vector<8x32xf32>
    %cst_36 = arith.constant 1.000000e+00 : f32
    %123 = vector.broadcast %cst_36 : f32 to vector<8x32xf32>
    %124 = arith.subf %122, %123 : vector<8x32xf32>
    %125 = vector.extract_strided_slice %117 {offsets = [0, 96], sizes = [8, 32], strides = [1, 1]} : vector<8x128xf32> to vector<8x32xf32>
    %126 = arith.mulf %119, %81 : vector<8x32xf32>
    %127 = arith.mulf %118, %124 : vector<8x32xf32>
    %128 = arith.addf %126, %127 : vector<8x32xf32>
    %129 = math.tanh %128 : vector<8x32xf32>
    %130 = arith.mulf %125, %129 : vector<8x32xf32>
    %131 = arith.truncf %130 : vector<8x32xf32> to vector<8x32xbf16>
    %132 = tpu.concatenate %131, %106 in 1 : vector<8x32xbf16>, vector<8x32xbf16> -> vector<8x64xbf16>
    %cst_37 = arith.constant dense<0.000000e+00> : vector<8x128xf32>
    %133 = tpu.matmul %132, %8, %cst_37 {dimension_numbers = #tpu.dot_dimension_numbers<[1], [0], [0], [1], [0, 0, 1, 1], [], []>} : vector<8x64xbf16>, vector<64x128xbf16>, vector<8x128xf32> -> vector<8x128xf32>
    %134 = arith.addf %133, %11 : vector<8x128xf32>
    %135 = arith.negf %134 : vector<8x128xf32>
    %136 = math.exp %135 : vector<8x128xf32>
    %cst_38 = arith.constant 1.000000e+00 : f32
    %137 = vector.broadcast %cst_38 : f32 to vector<8x128xf32>
    %138 = arith.addf %137, %136 : vector<8x128xf32>
    %139 = arith.divf %137, %138 : vector<8x128xf32>
    %140 = vector.extract_strided_slice %139 {offsets = [0, 0], sizes = [8, 32], strides = [1, 1]} : vector<8x128xf32> to vector<8x32xf32>
    %141 = vector.extract_strided_slice %139 {offsets = [0, 32], sizes = [8, 32], strides = [1, 1]} : vector<8x128xf32> to vector<8x32xf32>
    %142 = vector.extract_strided_slice %139 {offsets = [0, 64], sizes = [8, 32], strides = [1, 1]} : vector<8x128xf32> to vector<8x32xf32>
    %cst_39 = arith.constant 2.000000e+00 : f32
    %143 = vector.broadcast %cst_39 : f32 to vector<8x32xf32>
    %144 = arith.mulf %143, %142 : vector<8x32xf32>
    %cst_40 = arith.constant 1.000000e+00 : f32
    %145 = vector.broadcast %cst_40 : f32 to vector<8x32xf32>
    %146 = arith.subf %144, %145 : vector<8x32xf32>
    %147 = vector.extract_strided_slice %139 {offsets = [0, 96], sizes = [8, 32], strides = [1, 1]} : vector<8x128xf32> to vector<8x32xf32>
    %148 = arith.mulf %141, %103 : vector<8x32xf32>
    %149 = arith.mulf %140, %146 : vector<8x32xf32>
    %150 = arith.addf %148, %149 : vector<8x32xf32>
    %151 = math.tanh %150 : vector<8x32xf32>
    %152 = arith.mulf %147, %151 : vector<8x32xf32>
    %153 = arith.truncf %152 : vector<8x32xf32> to vector<8x32xbf16>
    %cst_41 = arith.constant 0.000000e+00 : f32
    %154 = vector.broadcast %cst_41 : f32 to vector<8x32xf32>
    %155 = arith.maximumf %152, %154 : vector<8x32xf32>
    %156 = arith.truncf %155 : vector<8x32xf32> to vector<8x32xbf16>
    %157 = vector.extract_strided_slice %6 {offsets = [24, 0], sizes = [8, 128], strides = [1, 1]} : vector<64x128xf32> to vector<8x128xf32>
    %cst_42 = arith.constant dense<0.000000e+00> : vector<8x128xf32>
    %158 = tpu.matmul %131, %7, %cst_42 {dimension_numbers = #tpu.dot_dimension_numbers<[1], [0], [0], [1], [0, 0, 1, 1], [], []>} : vector<8x32xbf16>, vector<32x128xbf16>, vector<8x128xf32> -> vector<8x128xf32>
    %159 = arith.addf %157, %158 : vector<8x128xf32>
    %160 = arith.negf %159 : vector<8x128xf32>
    %161 = math.exp %160 : vector<8x128xf32>
    %cst_43 = arith.constant 1.000000e+00 : f32
    %162 = vector.broadcast %cst_43 : f32 to vector<8x128xf32>
    %163 = arith.addf %162, %161 : vector<8x128xf32>
    %164 = arith.divf %162, %163 : vector<8x128xf32>
    %165 = vector.extract_strided_slice %164 {offsets = [0, 0], sizes = [8, 32], strides = [1, 1]} : vector<8x128xf32> to vector<8x32xf32>
    %166 = vector.extract_strided_slice %164 {offsets = [0, 32], sizes = [8, 32], strides = [1, 1]} : vector<8x128xf32> to vector<8x32xf32>
    %167 = vector.extract_strided_slice %164 {offsets = [0, 64], sizes = [8, 32], strides = [1, 1]} : vector<8x128xf32> to vector<8x32xf32>
    %cst_44 = arith.constant 2.000000e+00 : f32
    %168 = vector.broadcast %cst_44 : f32 to vector<8x32xf32>
    %169 = arith.mulf %168, %167 : vector<8x32xf32>
    %cst_45 = arith.constant 1.000000e+00 : f32
    %170 = vector.broadcast %cst_45 : f32 to vector<8x32xf32>
    %171 = arith.subf %169, %170 : vector<8x32xf32>
    %172 = vector.extract_strided_slice %164 {offsets = [0, 96], sizes = [8, 32], strides = [1, 1]} : vector<8x128xf32> to vector<8x32xf32>
    %173 = arith.mulf %166, %128 : vector<8x32xf32>
    %174 = arith.mulf %165, %171 : vector<8x32xf32>
    %175 = arith.addf %173, %174 : vector<8x32xf32>
    %176 = math.tanh %175 : vector<8x32xf32>
    %177 = arith.mulf %172, %176 : vector<8x32xf32>
    %178 = arith.truncf %177 : vector<8x32xf32> to vector<8x32xbf16>
    %179 = tpu.concatenate %178, %153 in 1 : vector<8x32xbf16>, vector<8x32xbf16> -> vector<8x64xbf16>
    %cst_46 = arith.constant dense<0.000000e+00> : vector<8x128xf32>
    %180 = tpu.matmul %179, %8, %cst_46 {dimension_numbers = #tpu.dot_dimension_numbers<[1], [0], [0], [1], [0, 0, 1, 1], [], []>} : vector<8x64xbf16>, vector<64x128xbf16>, vector<8x128xf32> -> vector<8x128xf32>
    %181 = arith.addf %180, %11 : vector<8x128xf32>
    %182 = arith.negf %181 : vector<8x128xf32>
    %183 = math.exp %182 : vector<8x128xf32>
    %cst_47 = arith.constant 1.000000e+00 : f32
    %184 = vector.broadcast %cst_47 : f32 to vector<8x128xf32>
    %185 = arith.addf %184, %183 : vector<8x128xf32>
    %186 = arith.divf %184, %185 : vector<8x128xf32>
    %187 = vector.extract_strided_slice %186 {offsets = [0, 0], sizes = [8, 32], strides = [1, 1]} : vector<8x128xf32> to vector<8x32xf32>
    %188 = vector.extract_strided_slice %186 {offsets = [0, 32], sizes = [8, 32], strides = [1, 1]} : vector<8x128xf32> to vector<8x32xf32>
    %189 = vector.extract_strided_slice %186 {offsets = [0, 64], sizes = [8, 32], strides = [1, 1]} : vector<8x128xf32> to vector<8x32xf32>
    %cst_48 = arith.constant 2.000000e+00 : f32
    %190 = vector.broadcast %cst_48 : f32 to vector<8x32xf32>
    %191 = arith.mulf %190, %189 : vector<8x32xf32>
    %cst_49 = arith.constant 1.000000e+00 : f32
    %192 = vector.broadcast %cst_49 : f32 to vector<8x32xf32>
    %193 = arith.subf %191, %192 : vector<8x32xf32>
    %194 = vector.extract_strided_slice %186 {offsets = [0, 96], sizes = [8, 32], strides = [1, 1]} : vector<8x128xf32> to vector<8x32xf32>
    %195 = arith.mulf %188, %150 : vector<8x32xf32>
    %196 = arith.mulf %187, %193 : vector<8x32xf32>
    %197 = arith.addf %195, %196 : vector<8x32xf32>
    %198 = math.tanh %197 : vector<8x32xf32>
    %199 = arith.mulf %194, %198 : vector<8x32xf32>
    %200 = arith.truncf %199 : vector<8x32xf32> to vector<8x32xbf16>
    %cst_50 = arith.constant 0.000000e+00 : f32
    %201 = vector.broadcast %cst_50 : f32 to vector<8x32xf32>
    %202 = arith.maximumf %199, %201 : vector<8x32xf32>
    %203 = arith.truncf %202 : vector<8x32xf32> to vector<8x32xbf16>
    %204 = vector.extract_strided_slice %6 {offsets = [32, 0], sizes = [8, 128], strides = [1, 1]} : vector<64x128xf32> to vector<8x128xf32>
    %cst_51 = arith.constant dense<0.000000e+00> : vector<8x128xf32>
    %205 = tpu.matmul %178, %7, %cst_51 {dimension_numbers = #tpu.dot_dimension_numbers<[1], [0], [0], [1], [0, 0, 1, 1], [], []>} : vector<8x32xbf16>, vector<32x128xbf16>, vector<8x128xf32> -> vector<8x128xf32>
    %206 = arith.addf %204, %205 : vector<8x128xf32>
    %207 = arith.negf %206 : vector<8x128xf32>
    %208 = math.exp %207 : vector<8x128xf32>
    %cst_52 = arith.constant 1.000000e+00 : f32
    %209 = vector.broadcast %cst_52 : f32 to vector<8x128xf32>
    %210 = arith.addf %209, %208 : vector<8x128xf32>
    %211 = arith.divf %209, %210 : vector<8x128xf32>
    %212 = vector.extract_strided_slice %211 {offsets = [0, 0], sizes = [8, 32], strides = [1, 1]} : vector<8x128xf32> to vector<8x32xf32>
    %213 = vector.extract_strided_slice %211 {offsets = [0, 32], sizes = [8, 32], strides = [1, 1]} : vector<8x128xf32> to vector<8x32xf32>
    %214 = vector.extract_strided_slice %211 {offsets = [0, 64], sizes = [8, 32], strides = [1, 1]} : vector<8x128xf32> to vector<8x32xf32>
    %cst_53 = arith.constant 2.000000e+00 : f32
    %215 = vector.broadcast %cst_53 : f32 to vector<8x32xf32>
    %216 = arith.mulf %215, %214 : vector<8x32xf32>
    %cst_54 = arith.constant 1.000000e+00 : f32
    %217 = vector.broadcast %cst_54 : f32 to vector<8x32xf32>
    %218 = arith.subf %216, %217 : vector<8x32xf32>
    %219 = vector.extract_strided_slice %211 {offsets = [0, 96], sizes = [8, 32], strides = [1, 1]} : vector<8x128xf32> to vector<8x32xf32>
    %220 = arith.mulf %213, %175 : vector<8x32xf32>
    %221 = arith.mulf %212, %218 : vector<8x32xf32>
    %222 = arith.addf %220, %221 : vector<8x32xf32>
    %223 = math.tanh %222 : vector<8x32xf32>
    %224 = arith.mulf %219, %223 : vector<8x32xf32>
    %225 = arith.truncf %224 : vector<8x32xf32> to vector<8x32xbf16>
    %226 = tpu.concatenate %225, %200 in 1 : vector<8x32xbf16>, vector<8x32xbf16> -> vector<8x64xbf16>
    %cst_55 = arith.constant dense<0.000000e+00> : vector<8x128xf32>
    %227 = tpu.matmul %226, %8, %cst_55 {dimension_numbers = #tpu.dot_dimension_numbers<[1], [0], [0], [1], [0, 0, 1, 1], [], []>} : vector<8x64xbf16>, vector<64x128xbf16>, vector<8x128xf32> -> vector<8x128xf32>
    %228 = arith.addf %227, %11 : vector<8x128xf32>
    %229 = arith.negf %228 : vector<8x128xf32>
    %230 = math.exp %229 : vector<8x128xf32>
    %cst_56 = arith.constant 1.000000e+00 : f32
    %231 = vector.broadcast %cst_56 : f32 to vector<8x128xf32>
    %232 = arith.addf %231, %230 : vector<8x128xf32>
    %233 = arith.divf %231, %232 : vector<8x128xf32>
    %234 = vector.extract_strided_slice %233 {offsets = [0, 0], sizes = [8, 32], strides = [1, 1]} : vector<8x128xf32> to vector<8x32xf32>
    %235 = vector.extract_strided_slice %233 {offsets = [0, 32], sizes = [8, 32], strides = [1, 1]} : vector<8x128xf32> to vector<8x32xf32>
    %236 = vector.extract_strided_slice %233 {offsets = [0, 64], sizes = [8, 32], strides = [1, 1]} : vector<8x128xf32> to vector<8x32xf32>
    %cst_57 = arith.constant 2.000000e+00 : f32
    %237 = vector.broadcast %cst_57 : f32 to vector<8x32xf32>
    %238 = arith.mulf %237, %236 : vector<8x32xf32>
    %cst_58 = arith.constant 1.000000e+00 : f32
    %239 = vector.broadcast %cst_58 : f32 to vector<8x32xf32>
    %240 = arith.subf %238, %239 : vector<8x32xf32>
    %241 = vector.extract_strided_slice %233 {offsets = [0, 96], sizes = [8, 32], strides = [1, 1]} : vector<8x128xf32> to vector<8x32xf32>
    %242 = arith.mulf %235, %197 : vector<8x32xf32>
    %243 = arith.mulf %234, %240 : vector<8x32xf32>
    %244 = arith.addf %242, %243 : vector<8x32xf32>
    %245 = math.tanh %244 : vector<8x32xf32>
    %246 = arith.mulf %241, %245 : vector<8x32xf32>
    %247 = arith.truncf %246 : vector<8x32xf32> to vector<8x32xbf16>
    %cst_59 = arith.constant 0.000000e+00 : f32
    %248 = vector.broadcast %cst_59 : f32 to vector<8x32xf32>
    %249 = arith.maximumf %246, %248 : vector<8x32xf32>
    %250 = arith.truncf %249 : vector<8x32xf32> to vector<8x32xbf16>
    %251 = vector.extract_strided_slice %6 {offsets = [40, 0], sizes = [8, 128], strides = [1, 1]} : vector<64x128xf32> to vector<8x128xf32>
    %cst_60 = arith.constant dense<0.000000e+00> : vector<8x128xf32>
    %252 = tpu.matmul %225, %7, %cst_60 {dimension_numbers = #tpu.dot_dimension_numbers<[1], [0], [0], [1], [0, 0, 1, 1], [], []>} : vector<8x32xbf16>, vector<32x128xbf16>, vector<8x128xf32> -> vector<8x128xf32>
    %253 = arith.addf %251, %252 : vector<8x128xf32>
    %254 = arith.negf %253 : vector<8x128xf32>
    %255 = math.exp %254 : vector<8x128xf32>
    %cst_61 = arith.constant 1.000000e+00 : f32
    %256 = vector.broadcast %cst_61 : f32 to vector<8x128xf32>
    %257 = arith.addf %256, %255 : vector<8x128xf32>
    %258 = arith.divf %256, %257 : vector<8x128xf32>
    %259 = vector.extract_strided_slice %258 {offsets = [0, 0], sizes = [8, 32], strides = [1, 1]} : vector<8x128xf32> to vector<8x32xf32>
    %260 = vector.extract_strided_slice %258 {offsets = [0, 32], sizes = [8, 32], strides = [1, 1]} : vector<8x128xf32> to vector<8x32xf32>
    %261 = vector.extract_strided_slice %258 {offsets = [0, 64], sizes = [8, 32], strides = [1, 1]} : vector<8x128xf32> to vector<8x32xf32>
    %cst_62 = arith.constant 2.000000e+00 : f32
    %262 = vector.broadcast %cst_62 : f32 to vector<8x32xf32>
    %263 = arith.mulf %262, %261 : vector<8x32xf32>
    %cst_63 = arith.constant 1.000000e+00 : f32
    %264 = vector.broadcast %cst_63 : f32 to vector<8x32xf32>
    %265 = arith.subf %263, %264 : vector<8x32xf32>
    %266 = vector.extract_strided_slice %258 {offsets = [0, 96], sizes = [8, 32], strides = [1, 1]} : vector<8x128xf32> to vector<8x32xf32>
    %267 = arith.mulf %260, %222 : vector<8x32xf32>
    %268 = arith.mulf %259, %265 : vector<8x32xf32>
    %269 = arith.addf %267, %268 : vector<8x32xf32>
    %270 = math.tanh %269 : vector<8x32xf32>
    %271 = arith.mulf %266, %270 : vector<8x32xf32>
    %272 = arith.truncf %271 : vector<8x32xf32> to vector<8x32xbf16>
    %273 = tpu.concatenate %272, %247 in 1 : vector<8x32xbf16>, vector<8x32xbf16> -> vector<8x64xbf16>
    %cst_64 = arith.constant dense<0.000000e+00> : vector<8x128xf32>
    %274 = tpu.matmul %273, %8, %cst_64 {dimension_numbers = #tpu.dot_dimension_numbers<[1], [0], [0], [1], [0, 0, 1, 1], [], []>} : vector<8x64xbf16>, vector<64x128xbf16>, vector<8x128xf32> -> vector<8x128xf32>
    %275 = arith.addf %274, %11 : vector<8x128xf32>
    %276 = arith.negf %275 : vector<8x128xf32>
    %277 = math.exp %276 : vector<8x128xf32>
    %cst_65 = arith.constant 1.000000e+00 : f32
    %278 = vector.broadcast %cst_65 : f32 to vector<8x128xf32>
    %279 = arith.addf %278, %277 : vector<8x128xf32>
    %280 = arith.divf %278, %279 : vector<8x128xf32>
    %281 = vector.extract_strided_slice %280 {offsets = [0, 0], sizes = [8, 32], strides = [1, 1]} : vector<8x128xf32> to vector<8x32xf32>
    %282 = vector.extract_strided_slice %280 {offsets = [0, 32], sizes = [8, 32], strides = [1, 1]} : vector<8x128xf32> to vector<8x32xf32>
    %283 = vector.extract_strided_slice %280 {offsets = [0, 64], sizes = [8, 32], strides = [1, 1]} : vector<8x128xf32> to vector<8x32xf32>
    %cst_66 = arith.constant 2.000000e+00 : f32
    %284 = vector.broadcast %cst_66 : f32 to vector<8x32xf32>
    %285 = arith.mulf %284, %283 : vector<8x32xf32>
    %cst_67 = arith.constant 1.000000e+00 : f32
    %286 = vector.broadcast %cst_67 : f32 to vector<8x32xf32>
    %287 = arith.subf %285, %286 : vector<8x32xf32>
    %288 = vector.extract_strided_slice %280 {offsets = [0, 96], sizes = [8, 32], strides = [1, 1]} : vector<8x128xf32> to vector<8x32xf32>
    %289 = arith.mulf %282, %244 : vector<8x32xf32>
    %290 = arith.mulf %281, %287 : vector<8x32xf32>
    %291 = arith.addf %289, %290 : vector<8x32xf32>
    %292 = math.tanh %291 : vector<8x32xf32>
    %293 = arith.mulf %288, %292 : vector<8x32xf32>
    %294 = arith.truncf %293 : vector<8x32xf32> to vector<8x32xbf16>
    %cst_68 = arith.constant 0.000000e+00 : f32
    %295 = vector.broadcast %cst_68 : f32 to vector<8x32xf32>
    %296 = arith.maximumf %293, %295 : vector<8x32xf32>
    %297 = arith.truncf %296 : vector<8x32xf32> to vector<8x32xbf16>
    %298 = vector.extract_strided_slice %6 {offsets = [48, 0], sizes = [8, 128], strides = [1, 1]} : vector<64x128xf32> to vector<8x128xf32>
    %cst_69 = arith.constant dense<0.000000e+00> : vector<8x128xf32>
    %299 = tpu.matmul %272, %7, %cst_69 {dimension_numbers = #tpu.dot_dimension_numbers<[1], [0], [0], [1], [0, 0, 1, 1], [], []>} : vector<8x32xbf16>, vector<32x128xbf16>, vector<8x128xf32> -> vector<8x128xf32>
    %300 = arith.addf %298, %299 : vector<8x128xf32>
    %301 = arith.negf %300 : vector<8x128xf32>
    %302 = math.exp %301 : vector<8x128xf32>
    %cst_70 = arith.constant 1.000000e+00 : f32
    %303 = vector.broadcast %cst_70 : f32 to vector<8x128xf32>
    %304 = arith.addf %303, %302 : vector<8x128xf32>
    %305 = arith.divf %303, %304 : vector<8x128xf32>
    %306 = vector.extract_strided_slice %305 {offsets = [0, 0], sizes = [8, 32], strides = [1, 1]} : vector<8x128xf32> to vector<8x32xf32>
    %307 = vector.extract_strided_slice %305 {offsets = [0, 32], sizes = [8, 32], strides = [1, 1]} : vector<8x128xf32> to vector<8x32xf32>
    %308 = vector.extract_strided_slice %305 {offsets = [0, 64], sizes = [8, 32], strides = [1, 1]} : vector<8x128xf32> to vector<8x32xf32>
    %cst_71 = arith.constant 2.000000e+00 : f32
    %309 = vector.broadcast %cst_71 : f32 to vector<8x32xf32>
    %310 = arith.mulf %309, %308 : vector<8x32xf32>
    %cst_72 = arith.constant 1.000000e+00 : f32
    %311 = vector.broadcast %cst_72 : f32 to vector<8x32xf32>
    %312 = arith.subf %310, %311 : vector<8x32xf32>
    %313 = vector.extract_strided_slice %305 {offsets = [0, 96], sizes = [8, 32], strides = [1, 1]} : vector<8x128xf32> to vector<8x32xf32>
    %314 = arith.mulf %307, %269 : vector<8x32xf32>
    %315 = arith.mulf %306, %312 : vector<8x32xf32>
    %316 = arith.addf %314, %315 : vector<8x32xf32>
    %317 = math.tanh %316 : vector<8x32xf32>
    %318 = arith.mulf %313, %317 : vector<8x32xf32>
    %319 = arith.truncf %318 : vector<8x32xf32> to vector<8x32xbf16>
    %320 = tpu.concatenate %319, %294 in 1 : vector<8x32xbf16>, vector<8x32xbf16> -> vector<8x64xbf16>
    %cst_73 = arith.constant dense<0.000000e+00> : vector<8x128xf32>
    %321 = tpu.matmul %320, %8, %cst_73 {dimension_numbers = #tpu.dot_dimension_numbers<[1], [0], [0], [1], [0, 0, 1, 1], [], []>} : vector<8x64xbf16>, vector<64x128xbf16>, vector<8x128xf32> -> vector<8x128xf32>
    %322 = arith.addf %321, %11 : vector<8x128xf32>
    %323 = arith.negf %322 : vector<8x128xf32>
    %324 = math.exp %323 : vector<8x128xf32>
    %cst_74 = arith.constant 1.000000e+00 : f32
    %325 = vector.broadcast %cst_74 : f32 to vector<8x128xf32>
    %326 = arith.addf %325, %324 : vector<8x128xf32>
    %327 = arith.divf %325, %326 : vector<8x128xf32>
    %328 = vector.extract_strided_slice %327 {offsets = [0, 0], sizes = [8, 32], strides = [1, 1]} : vector<8x128xf32> to vector<8x32xf32>
    %329 = vector.extract_strided_slice %327 {offsets = [0, 32], sizes = [8, 32], strides = [1, 1]} : vector<8x128xf32> to vector<8x32xf32>
    %330 = vector.extract_strided_slice %327 {offsets = [0, 64], sizes = [8, 32], strides = [1, 1]} : vector<8x128xf32> to vector<8x32xf32>
    %cst_75 = arith.constant 2.000000e+00 : f32
    %331 = vector.broadcast %cst_75 : f32 to vector<8x32xf32>
    %332 = arith.mulf %331, %330 : vector<8x32xf32>
    %cst_76 = arith.constant 1.000000e+00 : f32
    %333 = vector.broadcast %cst_76 : f32 to vector<8x32xf32>
    %334 = arith.subf %332, %333 : vector<8x32xf32>
    %335 = vector.extract_strided_slice %327 {offsets = [0, 96], sizes = [8, 32], strides = [1, 1]} : vector<8x128xf32> to vector<8x32xf32>
    %336 = arith.mulf %329, %291 : vector<8x32xf32>
    %337 = arith.mulf %328, %334 : vector<8x32xf32>
    %338 = arith.addf %336, %337 : vector<8x32xf32>
    %339 = math.tanh %338 : vector<8x32xf32>
    %340 = arith.mulf %335, %339 : vector<8x32xf32>
    %341 = arith.truncf %340 : vector<8x32xf32> to vector<8x32xbf16>
    %cst_77 = arith.constant 0.000000e+00 : f32
    %342 = vector.broadcast %cst_77 : f32 to vector<8x32xf32>
    %343 = arith.maximumf %340, %342 : vector<8x32xf32>
    %344 = arith.truncf %343 : vector<8x32xf32> to vector<8x32xbf16>
    %345 = vector.extract_strided_slice %6 {offsets = [56, 0], sizes = [8, 128], strides = [1, 1]} : vector<64x128xf32> to vector<8x128xf32>
    %cst_78 = arith.constant dense<0.000000e+00> : vector<8x128xf32>
    %346 = tpu.matmul %319, %7, %cst_78 {dimension_numbers = #tpu.dot_dimension_numbers<[1], [0], [0], [1], [0, 0, 1, 1], [], []>} : vector<8x32xbf16>, vector<32x128xbf16>, vector<8x128xf32> -> vector<8x128xf32>
    %347 = arith.addf %345, %346 : vector<8x128xf32>
    %348 = arith.negf %347 : vector<8x128xf32>
    %349 = math.exp %348 : vector<8x128xf32>
    %cst_79 = arith.constant 1.000000e+00 : f32
    %350 = vector.broadcast %cst_79 : f32 to vector<8x128xf32>
    %351 = arith.addf %350, %349 : vector<8x128xf32>
    %352 = arith.divf %350, %351 : vector<8x128xf32>
    %353 = vector.extract_strided_slice %352 {offsets = [0, 0], sizes = [8, 32], strides = [1, 1]} : vector<8x128xf32> to vector<8x32xf32>
    %354 = vector.extract_strided_slice %352 {offsets = [0, 32], sizes = [8, 32], strides = [1, 1]} : vector<8x128xf32> to vector<8x32xf32>
    %355 = vector.extract_strided_slice %352 {offsets = [0, 64], sizes = [8, 32], strides = [1, 1]} : vector<8x128xf32> to vector<8x32xf32>
    %cst_80 = arith.constant 2.000000e+00 : f32
    %356 = vector.broadcast %cst_80 : f32 to vector<8x32xf32>
    %357 = arith.mulf %356, %355 : vector<8x32xf32>
    %cst_81 = arith.constant 1.000000e+00 : f32
    %358 = vector.broadcast %cst_81 : f32 to vector<8x32xf32>
    %359 = arith.subf %357, %358 : vector<8x32xf32>
    %360 = vector.extract_strided_slice %352 {offsets = [0, 96], sizes = [8, 32], strides = [1, 1]} : vector<8x128xf32> to vector<8x32xf32>
    %361 = arith.mulf %354, %316 : vector<8x32xf32>
    %362 = arith.mulf %353, %359 : vector<8x32xf32>
    %363 = arith.addf %361, %362 : vector<8x32xf32>
    %364 = math.tanh %363 : vector<8x32xf32>
    %365 = arith.mulf %360, %364 : vector<8x32xf32>
    %366 = arith.truncf %365 : vector<8x32xf32> to vector<8x32xbf16>
    %367 = tpu.concatenate %366, %341 in 1 : vector<8x32xbf16>, vector<8x32xbf16> -> vector<8x64xbf16>
    %cst_82 = arith.constant dense<0.000000e+00> : vector<8x128xf32>
    %368 = tpu.matmul %367, %8, %cst_82 {dimension_numbers = #tpu.dot_dimension_numbers<[1], [0], [0], [1], [0, 0, 1, 1], [], []>} : vector<8x64xbf16>, vector<64x128xbf16>, vector<8x128xf32> -> vector<8x128xf32>
    %369 = arith.addf %368, %11 : vector<8x128xf32>
    %370 = arith.negf %369 : vector<8x128xf32>
    %371 = math.exp %370 : vector<8x128xf32>
    %cst_83 = arith.constant 1.000000e+00 : f32
    %372 = vector.broadcast %cst_83 : f32 to vector<8x128xf32>
    %373 = arith.addf %372, %371 : vector<8x128xf32>
    %374 = arith.divf %372, %373 : vector<8x128xf32>
    %375 = vector.extract_strided_slice %374 {offsets = [0, 0], sizes = [8, 32], strides = [1, 1]} : vector<8x128xf32> to vector<8x32xf32>
    %376 = vector.extract_strided_slice %374 {offsets = [0, 32], sizes = [8, 32], strides = [1, 1]} : vector<8x128xf32> to vector<8x32xf32>
    %377 = vector.extract_strided_slice %374 {offsets = [0, 64], sizes = [8, 32], strides = [1, 1]} : vector<8x128xf32> to vector<8x32xf32>
    %cst_84 = arith.constant 2.000000e+00 : f32
    %378 = vector.broadcast %cst_84 : f32 to vector<8x32xf32>
    %379 = arith.mulf %378, %377 : vector<8x32xf32>
    %cst_85 = arith.constant 1.000000e+00 : f32
    %380 = vector.broadcast %cst_85 : f32 to vector<8x32xf32>
    %381 = arith.subf %379, %380 : vector<8x32xf32>
    %382 = vector.extract_strided_slice %374 {offsets = [0, 96], sizes = [8, 32], strides = [1, 1]} : vector<8x128xf32> to vector<8x32xf32>
    %383 = arith.mulf %376, %338 : vector<8x32xf32>
    %384 = arith.mulf %375, %381 : vector<8x32xf32>
    %385 = arith.addf %383, %384 : vector<8x32xf32>
    %386 = math.tanh %385 : vector<8x32xf32>
    %387 = arith.mulf %382, %386 : vector<8x32xf32>
    %cst_86 = arith.constant 0.000000e+00 : f32
    %388 = vector.broadcast %cst_86 : f32 to vector<8x32xf32>
    %389 = arith.maximumf %387, %388 : vector<8x32xf32>
    %390 = arith.truncf %389 : vector<8x32xf32> to vector<8x32xbf16>
    %391 = tpu.concatenate %62, %109, %156, %203, %250, %297, %344, %390 in 0 : vector<8x32xbf16>, vector<8x32xbf16>, vector<8x32xbf16>, vector<8x32xbf16>, vector<8x32xbf16>, vector<8x32xbf16>, vector<8x32xbf16>, vector<8x32xbf16> -> vector<64x32xbf16>
    %c0_87 = arith.constant 0 : index
    %c0_88 = arith.constant 0 : index
    %392 = vector.load %arg7[%c0_87, %c0_88] : memref<32x128xbf16, #tpu.memory_space<vmem>>, vector<32x128xbf16>
    %cst_89 = arith.constant dense<0.000000e+00> : vector<64x128xf32>
    %393 = tpu.matmul %391, %392, %cst_89 {dimension_numbers = #tpu.dot_dimension_numbers<[1], [0], [0], [1], [0, 0, 1, 1], [], []>} : vector<64x32xbf16>, vector<32x128xbf16>, vector<64x128xf32> -> vector<64x128xf32>
    %c0_90 = arith.constant 0 : index
    %c0_91 = arith.constant 0 : index
    %394 = vector.load %arg8[%c0_90, %c0_91] : memref<1x128xf32, #tpu.memory_space<vmem>>, vector<1x128xf32>
    %395 = vector.shape_cast %394 : vector<1x128xf32> to vector<1x128xf32>
    %396 = vector.broadcast %395 : vector<1x128xf32> to vector<64x128xf32>
    %397 = arith.addf %393, %396 : vector<64x128xf32>
    %398 = arith.truncf %397 : vector<64x128xf32> to vector<64x128xbf16>
    %c0_92 = arith.constant 0 : index
    %c0_93 = arith.constant 0 : index
    %399 = vector.load %arg9[%c0_92, %c0_93] : memref<64x128xbf16, #tpu.memory_space<vmem>>, vector<64x128xbf16>
    tpu.vector_store %arg9[%c0_92, %c0_93], %398 {strides = array<i32>} : memref<64x128xbf16, #tpu.memory_space<vmem>>, vector<64x128xbf16>,
    return
  }
  func.func @transform_0(%arg0: i32) -> (i32, i32) {
    %c0_i32 = arith.constant 0 : i32
    %c0_i32_0 = arith.constant 0 : i32
    %c0_i32_1 = arith.constant 0 : i32
    return %c0_i32, %c0_i32_0 : i32, i32
  }
  func.func @transform_1(%arg0: i32) -> (i32, i32) {
    %c0_i32 = arith.constant 0 : i32
    %c0_i32_0 = arith.constant 0 : i32
    %c0_i32_1 = arith.constant 0 : i32
    return %c0_i32, %c0_i32_0 : i32, i32
  }
  func.func @transform_2(%arg0: i32) -> (i32, i32) {
    %c0_i32 = arith.constant 0 : i32
    %c0_i32_0 = arith.constant 0 : i32
    %c0_i32_1 = arith.constant 0 : i32
    return %c0_i32, %c0_i32_0 : i32, i32
  }
  func.func @transform_3(%arg0: i32) -> (i32, i32) {
    %c0_i32 = arith.constant 0 : i32
    %c0_i32_0 = arith.constant 0 : i32
    %c0_i32_1 = arith.constant 0 : i32
    return %c0_i32, %c0_i32_0 : i32, i32
  }
  func.func @transform_4(%arg0: i32) -> (i32, i32) {
    %c0_i32 = arith.constant 0 : i32
    %c0_i32_0 = arith.constant 0 : i32
    %c0_i32_1 = arith.constant 0 : i32
    return %c0_i32, %c0_i32_0 : i32, i32
  }
  func.func @transform_5(%arg0: i32) -> (i32, i32) {
    %c0_i32 = arith.constant 0 : i32
    %c0_i32_0 = arith.constant 0 : i32
    %c0_i32_1 = arith.constant 0 : i32
    return %c0_i32, %c0_i32_0 : i32, i32
  }
  func.func @transform_6(%arg0: i32) -> (i32, i32) {
    %c0_i32 = arith.constant 0 : i32
    %c0_i32_0 = arith.constant 0 : i32
    %c0_i32_1 = arith.constant 0 : i32
    return %c0_i32, %c0_i32_0 : i32, i32
  }
  func.func @transform_7(%arg0: i32) -> (i32, i32) {
    %c0_i32 = arith.constant 0 : i32
    %c0_i32_0 = arith.constant 0 : i32
    %c0_i32_1 = arith.constant 0 : i32
    return %c0_i32, %c0_i32_0 : i32, i32
  }
  func.func @transform_8(%arg0: i32) -> (i32, i32) {
    %c0_i32 = arith.constant 0 : i32
    %c0_i32_0 = arith.constant 0 : i32
    %c0_i32_1 = arith.constant 0 : i32
    return %c0_i32, %c0_i32_0 : i32, i32
  }
}

</mosaic_0001>

<llo_original>
// kernel: tpu_custom_call.1
$region0: #{tpu_custom_call.1}
  #allocation0 [shape = 'u32[]', space=smem, size = 0x4, offset = 0x4, fixed_abs, tag = 'smem constant byte address 0x4 - core index']
  #allocation1 [shape = 'u32[144,128]{1,0:T(1,128)}', space=vmem, size = 0x12000, scoped, tag = 'internal scratch']
  %s0 = inlined_call_operand.vmem [shape: bf16[64,16], index: 0, kind: input, shape index: {}]
  %s1 = inlined_call_operand.hbm [shape: bf16[16,128], index: 1, kind: input, shape index: {}]
  %s2 = inlined_call_operand.vmem [shape: bf16[32,128], index: 2, kind: input, shape index: {}]
  %s3 = inlined_call_operand.vmem [shape: f32[1,128], index: 3, kind: input, shape index: {}]
  %s4 = inlined_call_operand.vmem [shape: bf16[64,128], index: 4, kind: input, shape index: {}]
  %s5 = inlined_call_operand.vmem [shape: f32[1,128], index: 5, kind: input, shape index: {}]
  %s6 = inlined_call_operand.hbm [shape: bf16[32,128], index: 6, kind: input, shape index: {}]
  %s7 = inlined_call_operand.vmem [shape: f32[1,128], index: 7, kind: input, shape index: {}]
  %s8 = inlined_call_operand.hbm [shape: bf16[64,128], index: 8, kind: output, shape index: {}]
  %s9 = sld [smem:[#allocation0]]
  $region50: #{tpu_custom_call.1} parent=0
    _
  %s11 = ssub.s32 1, %s9
  %s12 = scalar_select 0, %s11, %s9
  $region1: #{tpu_custom_call.1} parent=0
    #allocation2 [shape = 'u8[4096]{0}', space=vmem, size = 0x1000, scoped, tag = 'input window, operand 1, single buffered']
    #allocation3 [shape = 's32[1]{0}', space=sflag, size = 0x4, scoped, tag = 'scoped memory for tpu_custom_call.1']
    #allocation4 [shape = 's32[1]{0}', space=sflag, size = 0x4, scoped, tag = 'scoped memory for tpu_custom_call.1']
    #allocation5 [shape = 'u8[8192]{0}', space=vmem, size = 0x2000, scoped, tag = 'input window, operand 6, single buffered']
    #allocation6 [shape = 's32[1]{0}', space=sflag, size = 0x4, scoped, tag = 'scoped memory for tpu_custom_call.1']
    #allocation7 [shape = 'u8[16384]{0}', space=vmem, size = 0x4000, scoped, tag = 'output window, operand 0, single buffered']
    %13 = vsyncpa [#allocation3], 0
    %14 = vsyncpa [#allocation6], 0
    %15 = vsyncpa [#allocation4], 0
    // Predicated region
    $region2: #{tpu_custom_call.1} parent=1 // pred_check
      _
    $region3: #{tpu_custom_call.1} parent=1 // pred_check_branch
      %17 = sbr.rel (0) target = $region5
    $region4: #{tpu_custom_call.1} parent=1 // pred_region
      _
    $region5: #{tpu_custom_call.1} parent=1 // pred_fallthru
      _
    // Predicated region
    $region6: #{tpu_custom_call.1} parent=1 // pred_check
      _
    $region7: #{tpu_custom_call.1} parent=1 // pred_check_branch
      %19 = sbr.rel (0) target = $region9
    $region8: #{tpu_custom_call.1} parent=1 // pred_region
      %s21 = ssub.s32 128, 128
      %22 = vsyncadd [#allocation3], %s21
      %s23 = sshll.u32 [#allocation2], 4
      %s24 = int_to_ptr.vmem [resolvable:$true] %s23
      %29 = dma.hbm_to_vmem [thread:$0]  %s1, 128, %s24, [#allocation3], 64, 64, 4
    $region9: #{tpu_custom_call.1} parent=1 // pred_fallthru
      _
    // Predicated region
    $region10: #{tpu_custom_call.1} parent=1 // pred_check
      _
    $region11: #{tpu_custom_call.1} parent=1 // pred_check_branch
      %31 = sbr.rel (0) target = $region13
    $region12: #{tpu_custom_call.1} parent=1 // pred_region
      _
    $region13: #{tpu_custom_call.1} parent=1 // pred_fallthru
      _
    // Predicated region
    $region14: #{tpu_custom_call.1} parent=1 // pred_check
      _
    $region15: #{tpu_custom_call.1} parent=1 // pred_check_branch
      %33 = sbr.rel (0) target = $region17
    $region16: #{tpu_custom_call.1} parent=1 // pred_region
      _
    $region17: #{tpu_custom_call.1} parent=1 // pred_fallthru
      _
    // Predicated region
    $region18: #{tpu_custom_call.1} parent=1 // pred_check
      _
    $region19: #{tpu_custom_call.1} parent=1 // pred_check_branch
      %35 = sbr.rel (0) target = $region21
    $region20: #{tpu_custom_call.1} parent=1 // pred_region
      _
    $region21: #{tpu_custom_call.1} parent=1 // pred_fallthru
      _
    // Predicated region
    $region22: #{tpu_custom_call.1} parent=1 // pred_check
      _
    $region23: #{tpu_custom_call.1} parent=1 // pred_check_branch
      %37 = sbr.rel (0) target = $region25
    $region24: #{tpu_custom_call.1} parent=1 // pred_region
      _
    $region25: #{tpu_custom_call.1} parent=1 // pred_fallthru
      _
    // Predicated region
    $region26: #{tpu_custom_call.1} parent=1 // pred_check
      _
    $region27: #{tpu_custom_call.1} parent=1 // pred_check_branch
      %39 = sbr.rel (0) target = $region29
    $region28: #{tpu_custom_call.1} parent=1 // pred_region
      %s41 = ssub.s32 256, 256
      %42 = vsyncadd [#allocation6], %s41
      %s43 = sshll.u32 [#allocation5], 4
      %s44 = int_to_ptr.vmem [resolvable:$true] %s43
      %49 = dma.hbm_to_vmem [thread:$0]  %s6, 256, %s44, [#allocation6], 64, 64, 4
    $region29: #{tpu_custom_call.1} parent=1 // pred_fallthru
      _
    // Predicated region
    $region30: #{tpu_custom_call.1} parent=1 // pred_check
      _
    $region31: #{tpu_custom_call.1} parent=1 // pred_check_branch
      %51 = sbr.rel (0) target = $region33
    $region32: #{tpu_custom_call.1} parent=1 // pred_region
      _
    $region33: #{tpu_custom_call.1} parent=1 // pred_fallthru
      _
    // Predicated region
    $region34: #{tpu_custom_call.1} parent=1 // pred_check
      _
    $region35: #{tpu_custom_call.1} parent=1 // pred_check_branch
      %53 = sbr.rel (0) target = $region37
    $region36: #{tpu_custom_call.1} parent=1 // pred_region
      %54 = dma.done [#allocation3], 128
    $region37: #{tpu_custom_call.1} parent=1 // pred_fallthru
      _
    // Predicated region
    $region38: #{tpu_custom_call.1} parent=1 // pred_check
      _
    $region39: #{tpu_custom_call.1} parent=1 // pred_check_branch
      %56 = sbr.rel (0) target = $region41
    $region40: #{tpu_custom_call.1} parent=1 // pred_region
      %57 = dma.done [#allocation6], 256
    $region41: #{tpu_custom_call.1} parent=1 // pred_fallthru
      _
    %v59 = vld [vmem:[%s0] sm:$0xf]
    %v60 = vld [vmem:[%s0 + $0x4] sm:$0xf]
    %v61 = vld [vmem:[%s0 + $0x8] sm:$0xf]
    %v62 = vld [vmem:[%s0 + $0xc] sm:$0xf]
    %v63 = vld [vmem:[%s0 + $0x10] sm:$0xf]
    %v64 = vld [vmem:[%s0 + $0x14] sm:$0xf]
    %v65 = vld [vmem:[%s0 + $0x18] sm:$0xf]
    %v66 = vld [vmem:[%s0 + $0x1c] sm:$0xf]
    %v67 = vld [vmem:[#allocation2] sm:$0xf]
    %v68 = vld [vmem:[#allocation2 + $0x4] sm:$0xf]
    %v69 = vld [vmem:[%s3] sm:$0x1]
    %v71 = vlaneseq
    %v72 = vshrl.u32 %v71, 7
    %v73 = vsub.s32 0, %v72
    %v74 = vrot.slane %v69, %v73
    %v84 = vunpack.c.l.b16 %v59
    %v85 = vunpack.c.l.b16 %v60
    %v86 = vunpack.c.l.b16 %v61
    %v87 = vunpack.c.l.b16 %v62
    %v88 = vunpack.c.l.b16 %v63
    %v89 = vunpack.c.l.b16 %v64
    %v90 = vunpack.c.l.b16 %v65
    %v91 = vunpack.c.l.b16 %v66
    %v92 = vpack.c.b16 %v85, %v84
    %v93 = vpack.c.b16 %v87, %v86
    %v94 = vpack.c.b16 %v89, %v88
    %v95 = vpack.c.b16 %v91, %v90
    %v98 = vunpack.c.l.b16 %v67
    %v99 = vunpack.c.l.b16 %v68
    %v100 = vpack.c.b16 %v99, %v98
    %vm102 = vcmask 130048
    %v104 = vsel %vm102, %v92, 0
    %v107 = vsel %vm102, %v93, 0
    %v110 = vsel %vm102, %v94, 0
    %v113 = vsel %vm102, %v95, 0
    %115 = vmatprep.subr.bf16.mxu0 0
    %116 = vmatpush1.bf16.msra.mxu0 %v100
    %117 = vmatprep.subr.bf16.mxu0 0
    %118 = vmatpush1.bf16.msra.mxu0 0
    %119 = vmatprep.subr.bf16.mxu0 0
    %120 = vmatpush1.bf16.msra.mxu0 0
    %121 = vmatprep.subr.bf16.mxu0 0
    %122 = vmatpush1.bf16.msra.mxu0 0
    %123 = vmatprep.subr.bf16.mxu0 0
    %124 = vmatpush1.bf16.msra.mxu0 0
    %125 = vmatprep.subr.bf16.mxu0 0
    %126 = vmatpush1.bf16.msra.mxu0 0
    %127 = vmatprep.subr.bf16.mxu0 0
    %128 = vmatpush1.bf16.msra.mxu0 0
    %129 = vmatprep.subr.bf16.mxu0 0
    %130 = vmatpush1.bf16.msra.mxu0 0
    %131 = vmatprep.subr.bf16.mxu0 0
    %132 = vmatpush1.bf16.msra.mxu0 0
    %133 = vmatprep.subr.bf16.mxu0 0
    %134 = vmatpush1.bf16.msra.mxu0 0
    %135 = vmatprep.subr.bf16.mxu0 0
    %136 = vmatpush1.bf16.msra.mxu0 0
    %137 = vmatprep.subr.bf16.mxu0 0
    %138 = vmatpush1.bf16.msra.mxu0 0
    %139 = vmatprep.subr.bf16.mxu0 0
    %140 = vmatpush1.bf16.msra.mxu0 0
    %141 = vmatprep.subr.bf16.mxu0 0
    %142 = vmatpush1.bf16.msra.mxu0 0
    %143 = vmatprep.subr.bf16.mxu0 0
    %144 = vmatpush1.bf16.msra.mxu0 0
    %145 = vmatprep.subr.bf16.mxu0 0
    %146 = vmatpush1.bf16.msra.mxu0 0
    %147 = vmatprep.mubr.bf16.mxu0 0
    %148 = vmatmul.mubr.bf16.gmra.mrb[0].mxu0 %v104
    %v149 = vpop.f32.mrb[0].mxu0
    %v150 = vadd.f32 %v74, %v149
    %v151 = vpop.f32.mrb[0].mxu0
    %v152 = vpop.f32.mrb[0].mxu0
    %v153 = vadd.f32 %v74, %v152
    %v154 = vpop.f32.mrb[0].mxu0
    %155 = vmatprep.mubr.bf16.mxu0 0
    %156 = vmatmul.mubr.bf16.gmra.mrb[0].mxu0 %v107
    %v157 = vpop.f32.mrb[0].mxu0
    %v158 = vadd.f32 %v74, %v157
    %v159 = vpop.f32.mrb[0].mxu0
    %v160 = vpop.f32.mrb[0].mxu0
    %v161 = vadd.f32 %v74, %v160
    %v162 = vpop.f32.mrb[0].mxu0
    %163 = vmatprep.mubr.bf16.mxu0 0
    %164 = vmatmul.mubr.bf16.gmra.mrb[0].mxu0 %v110
    %v165 = vpop.f32.mrb[0].mxu0
    %v166 = vadd.f32 %v74, %v165
    %v167 = vpop.f32.mrb[0].mxu0
    %v168 = vpop.f32.mrb[0].mxu0
    %v169 = vadd.f32 %v74, %v168
    %v170 = vpop.f32.mrb[0].mxu0
    %171 = vmatprep.mubr.bf16.mxu0 0
    %172 = vmatmul.mubr.bf16.gmra.mrb[0].mxu0 %v113
    %v173 = vpop.f32.mrb[0].mxu0
    %v174 = vadd.f32 %v74, %v173
    %v175 = vpop.f32.mrb[0].mxu0
    %v176 = vpop.f32.mrb[0].mxu0
    %v177 = vadd.f32 %v74, %v176
    %v178 = vpop.f32.mrb[0].mxu0
    %179 = vdwg.mxu0
    %v180 = vld [vmem:[%s2] sm:$0xf]
    %v181 = vld [vmem:[%s2 + $0x4] sm:$0xf]
    %v182 = vld [vmem:[%s2 + $0x8] sm:$0xf]
    %v183 = vld [vmem:[%s2 + $0xc] sm:$0xf]
    %v184 = vld [vmem:[%s4] sm:$0xf]
    %v185 = vld [vmem:[%s4 + $0x4] sm:$0xf]
    %v186 = vld [vmem:[%s4 + $0x8] sm:$0xf]
    %v187 = vld [vmem:[%s4 + $0xc] sm:$0xf]
    %v188 = vld [vmem:[%s4 + $0x10] sm:$0xf]
    %v189 = vld [vmem:[%s4 + $0x14] sm:$0xf]
    %v190 = vld [vmem:[%s4 + $0x18] sm:$0xf]
    %v191 = vld [vmem:[%s4 + $0x1c] sm:$0xf]
    %v192 = vld [vmem:[%s5] sm:$0x1]
    %v194 = vlaneseq
    %v195 = vshrl.u32 %v194, 7
    %v196 = vsub.s32 0, %v195
    %v197 = vrot.slane %v192, %v196
    %v203 = vunpack.c.l.b16 %v180
    %v204 = vunpack.c.l.b16 %v181
    %v205 = vunpack.c.l.b16 %v182
    %v206 = vunpack.c.l.b16 %v183
    %v207 = vpack.c.b16 %v204, %v203
    %v208 = vpack.c.b16 %v206, %v205
    %vm211 = vcmask 261120
    %v213 = vsel %vm211, 0, 0
    %215 = vmatprep.subr.bf16.mxu0 0
    %216 = vmatpush1.bf16.msra.mxu0 %v207
    %217 = vmatprep.subr.bf16.mxu0 0
    %218 = vmatpush1.bf16.msra.mxu0 %v208
    %219 = vmatprep.subr.bf16.mxu0 0
    %220 = vmatpush1.bf16.msra.mxu0 0
    %221 = vmatprep.subr.bf16.mxu0 0
    %222 = vmatpush1.bf16.msra.mxu0 0
    %223 = vmatprep.subr.bf16.mxu0 0
    %224 = vmatpush1.bf16.msra.mxu0 0
    %225 = vmatprep.subr.bf16.mxu0 0
    %226 = vmatpush1.bf16.msra.mxu0 0
    %227 = vmatprep.subr.bf16.mxu0 0
    %228 = vmatpush1.bf16.msra.mxu0 0
    %229 = vmatprep.subr.bf16.mxu0 0
    %230 = vmatpush1.bf16.msra.mxu0 0
    %231 = vmatprep.subr.bf16.mxu0 0
    %232 = vmatpush1.bf16.msra.mxu0 0
    %233 = vmatprep.subr.bf16.mxu0 0
    %234 = vmatpush1.bf16.msra.mxu0 0
    %235 = vmatprep.subr.bf16.mxu0 0
    %236 = vmatpush1.bf16.msra.mxu0 0
    %237 = vmatprep.subr.bf16.mxu0 0
    %238 = vmatpush1.bf16.msra.mxu0 0
    %239 = vmatprep.subr.bf16.mxu0 0
    %240 = vmatpush1.bf16.msra.mxu0 0
    %241 = vmatprep.subr.bf16.mxu0 0
    %242 = vmatpush1.bf16.msra.mxu0 0
    %243 = vmatprep.subr.bf16.mxu0 0
    %244 = vmatpush1.bf16.msra.mxu0 0
    %245 = vmatprep.subr.bf16.mxu0 0
    %246 = vmatpush1.bf16.msra.mxu0 0
    %247 = vmatprep.mubr.bf16.mxu0 0
    %248 = vmatmul.mubr.bf16.gmra.mrb[0].mxu0 %v213
    %v249 = vpop.f32.mrb[0].mxu0
    %v250 = vadd.f32 0.0, %v249
    %v251 = vpop.f32.mrb[0].mxu0
    %v252 = vpop.f32.mrb[0].mxu0
    %v253 = vpop.f32.mrb[0].mxu0
    %254 = vdwg.mxu0
    %v255 = vadd.f32 %v150, %v250
    %v256 = vxor.u32 %v255, 2147483648
    %v257 = vmul.f32 %v256, 1.442695
    %v258 = vpow.pop %v257
    %v259 = vadd.f32 %v258, 1.0
    %v260 = vrcp.pop %v259
    %v261 = vmul.f32 1.0, %v260
    %v262 = vmul.f32 %v261, 2.0
    %v263 = vsub.f32 %v262, 1.0
    %v264 = vmul.f32 %v261, 0.0
    %266 = vrot.lane.b32.xlu0 %v263, 64
    %v267 = vpop.permute.xlu0 %266
    %v269 = vmul.f32 %v261, %v267
    %271 = vrot.lane.b32.xlu0 %v269, 32
    %v272 = vpop.permute.xlu0 %271
    %v274 = vadd.f32 %v264, %v272
    %v275 = vtanh.pop %v274
    %277 = vrot.lane.b32.xlu0 %v275, 64
    %v278 = vpop.permute.xlu0 %277
    %v280 = vmul.f32 %v261, %v278
    %v281 = vpack.c.bf16 %v280, %v280
    %283 = vrot.lane.b32.xlu0 %v281, 32
    %v284 = vpop.permute.xlu0 %283
    %v286 = vsel %vm211, %v284, 0
    %v295 = vunpack.c.l.b16 %v184
    %v296 = vunpack.c.l.b16 %v185
    %v297 = vunpack.c.l.b16 %v186
    %v298 = vunpack.c.l.b16 %v187
    %v299 = vunpack.c.l.b16 %v188
    %v300 = vunpack.c.l.b16 %v189
    %v301 = vunpack.c.l.b16 %v190
    %v302 = vunpack.c.l.b16 %v191
    %v303 = vpack.c.b16 %v296, %v295
    %v304 = vpack.c.b16 %v298, %v297
    %v305 = vpack.c.b16 %v300, %v299
    %v306 = vpack.c.b16 %v302, %v301
    %vm311 = vcmask 523264
    %v312 = vsel %vm311, %v286, 0
    %314 = vmatprep.subr.bf16.mxu0 0
    %315 = vmatpush1.bf16.msra.mxu0 %v303
    %316 = vmatprep.subr.bf16.mxu0 0
    %317 = vmatpush1.bf16.msra.mxu0 %v304
    %318 = vmatprep.subr.bf16.mxu0 0
    %319 = vmatpush1.bf16.msra.mxu0 %v305
    %320 = vmatprep.subr.bf16.mxu0 0
    %321 = vmatpush1.bf16.msra.mxu0 %v306
    %322 = vmatprep.subr.bf16.mxu0 0
    %323 = vmatpush1.bf16.msra.mxu0 0
    %324 = vmatprep.subr.bf16.mxu0 0
    %325 = vmatpush1.bf16.msra.mxu0 0
    %326 = vmatprep.subr.bf16.mxu0 0
    %327 = vmatpush1.bf16.msra.mxu0 0
    %328 = vmatprep.subr.bf16.mxu0 0
    %329 = vmatpush1.bf16.msra.mxu0 0
    %330 = vmatprep.subr.bf16.mxu0 0
    %331 = vmatpush1.bf16.msra.mxu0 0
    %332 = vmatprep.subr.bf16.mxu0 0
    %333 = vmatpush1.bf16.msra.mxu0 0
    %334 = vmatprep.subr.bf16.mxu0 0
    %335 = vmatpush1.bf16.msra.mxu0 0
    %336 = vmatprep.subr.bf16.mxu0 0
    %337 = vmatpush1.bf16.msra.mxu0 0
    %338 = vmatprep.subr.bf16.mxu0 0
    %339 = vmatpush1.bf16.msra.mxu0 0
    %340 = vmatprep.subr.bf16.mxu0 0
    %341 = vmatpush1.bf16.msra.mxu0 0
    %342 = vmatprep.subr.bf16.mxu0 0
    %343 = vmatpush1.bf16.msra.mxu0 0
    %344 = vmatprep.subr.bf16.mxu0 0
    %345 = vmatpush1.bf16.msra.mxu0 0
    %346 = vmatprep.mubr.bf16.mxu0 0
    %347 = vmatmul.mubr.bf16.gmra.mrb[0].mxu0 %v312
    %v348 = vpop.f32.mrb[0].mxu0
    %v349 = vadd.f32 %v197, %v348
    %v350 = vpop.f32.mrb[0].mxu0
    %v351 = vpop.f32.mrb[0].mxu0
    %v352 = vpop.f32.mrb[0].mxu0
    %353 = vdwg.mxu0
    %v354 = vxor.u32 %v349, 2147483648
    %v355 = vmul.f32 %v354, 1.442695
    %v356 = vpow.pop %v355
    %v357 = vadd.f32 %v356, 1.0
    %v358 = vrcp.pop %v357
    %v359 = vmul.f32 1.0, %v358
    %v360 = vmul.f32 %v359, 2.0
    %v361 = vsub.f32 %v360, 1.0
    %v362 = vmul.f32 %v359, 0.0
    %364 = vrot.lane.b32.xlu0 %v361, 64
    %v365 = vpop.permute.xlu0 %364
    %v367 = vmul.f32 %v359, %v365
    %369 = vrot.lane.b32.xlu0 %v367, 32
    %v370 = vpop.permute.xlu0 %369
    %v372 = vadd.f32 %v362, %v370
    %v373 = vtanh.pop %v372
    %375 = vrot.lane.b32.xlu0 %v373, 64
    %v376 = vpop.permute.xlu0 %375
    %v378 = vmul.f32 %v359, %v376
    %v379 = vpack.c.bf16 %v378, %v378
    %v380 = vmax.f32 %v378, 0.0
    %v381 = vpack.c.bf16 %v380, %v380
    %v382 = vsel %vm211, %v284, 0
    %384 = vmatprep.subr.bf16.mxu0 0
    %385 = vmatpush1.bf16.msra.mxu0 %v207
    %386 = vmatprep.subr.bf16.mxu0 0
    %387 = vmatpush1.bf16.msra.mxu0 %v208
    %388 = vmatprep.subr.bf16.mxu0 0
    %389 = vmatpush1.bf16.msra.mxu0 0
    %390 = vmatprep.subr.bf16.mxu0 0
    %391 = vmatpush1.bf16.msra.mxu0 0
    %392 = vmatprep.subr.bf16.mxu0 0
    %393 = vmatpush1.bf16.msra.mxu0 0
    %394 = vmatprep.subr.bf16.mxu0 0
    %395 = vmatpush1.bf16.msra.mxu0 0
    %396 = vmatprep.subr.bf16.mxu0 0
    %397 = vmatpush1.bf16.msra.mxu0 0
    %398 = vmatprep.subr.bf16.mxu0 0
    %399 = vmatpush1.bf16.msra.mxu0 0
    %400 = vmatprep.subr.bf16.mxu0 0
    %401 = vmatpush1.bf16.msra.mxu0 0
    %402 = vmatprep.subr.bf16.mxu0 0
    %403 = vmatpush1.bf16.msra.mxu0 0
    %404 = vmatprep.subr.bf16.mxu0 0
    %405 = vmatpush1.bf16.msra.mxu0 0
    %406 = vmatprep.subr.bf16.mxu0 0
    %407 = vmatpush1.bf16.msra.mxu0 0
    %408 = vmatprep.subr.bf16.mxu0 0
    %409 = vmatpush1.bf16.msra.mxu0 0
    %410 = vmatprep.subr.bf16.mxu0 0
    %411 = vmatpush1.bf16.msra.mxu0 0
    %412 = vmatprep.subr.bf16.mxu0 0
    %413 = vmatpush1.bf16.msra.mxu0 0
    %414 = vmatprep.subr.bf16.mxu0 0
    %415 = vmatpush1.bf16.msra.mxu0 0
    %416 = vmatprep.mubr.bf16.mxu0 0
    %417 = vmatmul.mubr.bf16.gmra.mrb[0].mxu0 %v382
    %v418 = vpop.f32.mrb[0].mxu0
    %v419 = vadd.f32 0.0, %v418
    %v420 = vpop.f32.mrb[0].mxu0
    %v421 = vpop.f32.mrb[0].mxu0
    %v422 = vpop.f32.mrb[0].mxu0
    %423 = vdwg.mxu0
    %v424 = vadd.f32 %v153, %v419
    %v425 = vxor.u32 %v424, 2147483648
    %v426 = vmul.f32 %v425, 1.442695
    %v427 = vpow.pop %v426
    %v428 = vadd.f32 %v427, 1.0
    %v429 = vrcp.pop %v428
    %v430 = vmul.f32 1.0, %v429
    %v431 = vmul.f32 %v430, 2.0
    %v432 = vsub.f32 %v431, 1.0
    %v433 = vmul.f32 %v430, %v274
    %435 = vrot.lane.b32.xlu0 %v432, 64
    %v436 = vpop.permute.xlu0 %435
    %v438 = vmul.f32 %v430, %v436
    %440 = vrot.lane.b32.xlu0 %v438, 32
    %v441 = vpop.permute.xlu0 %440
    %v443 = vadd.f32 %v433, %v441
    %v444 = vtanh.pop %v443
    %446 = vrot.lane.b32.xlu0 %v444, 64
    %v447 = vpop.permute.xlu0 %446
    %v449 = vmul.f32 %v430, %v447
    %v450 = vpack.c.bf16 %v449, %v449
    %452 = vrot.lane.b32.xlu0 %v450, 32
    %v453 = vpop.permute.xlu0 %452
    %455 = vrot.lane.b32.xlu0 %v379, 64
    %v456 = vpop.permute.xlu0 %455
    %v459 = vsel %vm211, %v453, %v456
    %v460 = vsel %vm311, %v459, 0
    %462 = vmatprep.subr.bf16.mxu0 0
    %463 = vmatpush1.bf16.msra.mxu0 %v303
    %464 = vmatprep.subr.bf16.mxu0 0
    %465 = vmatpush1.bf16.msra.mxu0 %v304
    %466 = vmatprep.subr.bf16.mxu0 0
    %467 = vmatpush1.bf16.msra.mxu0 %v305
    %468 = vmatprep.subr.bf16.mxu0 0
    %469 = vmatpush1.bf16.msra.mxu0 %v306
    %470 = vmatprep.subr.bf16.mxu0 0
    %471 = vmatpush1.bf16.msra.mxu0 0
    %472 = vmatprep.subr.bf16.mxu0 0
    %473 = vmatpush1.bf16.msra.mxu0 0
    %474 = vmatprep.subr.bf16.mxu0 0
    %475 = vmatpush1.bf16.msra.mxu0 0
    %476 = vmatprep.subr.bf16.mxu0 0
    %477 = vmatpush1.bf16.msra.mxu0 0
    %478 = vmatprep.subr.bf16.mxu0 0
    %479 = vmatpush1.bf16.msra.mxu0 0
    %480 = vmatprep.subr.bf16.mxu0 0
    %481 = vmatpush1.bf16.msra.mxu0 0
    %482 = vmatprep.subr.bf16.mxu0 0
    %483 = vmatpush1.bf16.msra.mxu0 0
    %484 = vmatprep.subr.bf16.mxu0 0
    %485 = vmatpush1.bf16.msra.mxu0 0
    %486 = vmatprep.subr.bf16.mxu0 0
    %487 = vmatpush1.bf16.msra.mxu0 0
    %488 = vmatprep.subr.bf16.mxu0 0
    %489 = vmatpush1.bf16.msra.mxu0 0
    %490 = vmatprep.subr.bf16.mxu0 0
    %491 = vmatpush1.bf16.msra.mxu0 0
    %492 = vmatprep.subr.bf16.mxu0 0
    %493 = vmatpush1.bf16.msra.mxu0 0
    %494 = vmatprep.mubr.bf16.mxu0 0
    %495 = vmatmul.mubr.bf16.gmra.mrb[0].mxu0 %v460
    %v496 = vpop.f32.mrb[0].mxu0
    %v497 = vadd.f32 %v197, %v496
    %v498 = vpop.f32.mrb[0].mxu0
    %v499 = vpop.f32.mrb[0].mxu0
    %v500 = vpop.f32.mrb[0].mxu0
    %501 = vdwg.mxu0
    %v502 = vxor.u32 %v497, 2147483648
    %v503 = vmul.f32 %v502, 1.442695
    %v504 = vpow.pop %v503
    %v505 = vadd.f32 %v504, 1.0
    %v506 = vrcp.pop %v505
    %v507 = vmul.f32 1.0, %v506
    %v508 = vmul.f32 %v507, 2.0
    %v509 = vsub.f32 %v508, 1.0
    %v510 = vmul.f32 %v507, %v372
    %512 = vrot.lane.b32.xlu0 %v509, 64
    %v513 = vpop.permute.xlu0 %512
    %v515 = vmul.f32 %v507, %v513
    %517 = vrot.lane.b32.xlu0 %v515, 32
    %v518 = vpop.permute.xlu0 %517
    %v520 = vadd.f32 %v510, %v518
    %v521 = vtanh.pop %v520
    %523 = vrot.lane.b32.xlu0 %v521, 64
    %v524 = vpop.permute.xlu0 %523
    %v526 = vmul.f32 %v507, %v524
    %v527 = vpack.c.bf16 %v526, %v526
    %v528 = vmax.f32 %v526, 0.0
    %v529 = vpack.c.bf16 %v528, %v528
    %v530 = vsel %vm211, %v453, 0
    %532 = vmatprep.subr.bf16.mxu0 0
    %533 = vmatpush1.bf16.msra.mxu0 %v207
    %534 = vmatprep.subr.bf16.mxu0 0
    %535 = vmatpush1.bf16.msra.mxu0 %v208
    %536 = vmatprep.subr.bf16.mxu0 0
    %537 = vmatpush1.bf16.msra.mxu0 0
    %538 = vmatprep.subr.bf16.mxu0 0
    %539 = vmatpush1.bf16.msra.mxu0 0
    %540 = vmatprep.subr.bf16.mxu0 0
    %541 = vmatpush1.bf16.msra.mxu0 0
    %542 = vmatprep.subr.bf16.mxu0 0
    %543 = vmatpush1.bf16.msra.mxu0 0
    %544 = vmatprep.subr.bf16.mxu0 0
    %545 = vmatpush1.bf16.msra.mxu0 0
    %546 = vmatprep.subr.bf16.mxu0 0
    %547 = vmatpush1.bf16.msra.mxu0 0
    %548 = vmatprep.subr.bf16.mxu0 0
    %549 = vmatpush1.bf16.msra.mxu0 0
    %550 = vmatprep.subr.bf16.mxu0 0
    %551 = vmatpush1.bf16.msra.mxu0 0
    %552 = vmatprep.subr.bf16.mxu0 0
    %553 = vmatpush1.bf16.msra.mxu0 0
    %554 = vmatprep.subr.bf16.mxu0 0
    %555 = vmatpush1.bf16.msra.mxu0 0
    %556 = vmatprep.subr.bf16.mxu0 0
    %557 = vmatpush1.bf16.msra.mxu0 0
    %558 = vmatprep.subr.bf16.mxu0 0
    %559 = vmatpush1.bf16.msra.mxu0 0
    %560 = vmatprep.subr.bf16.mxu0 0
    %561 = vmatpush1.bf16.msra.mxu0 0
    %562 = vmatprep.subr.bf16.mxu0 0
    %563 = vmatpush1.bf16.msra.mxu0 0
    %564 = vmatprep.mubr.bf16.mxu0 0
    %565 = vmatmul.mubr.bf16.gmra.mrb[0].mxu0 %v530
    %v566 = vpop.f32.mrb[0].mxu0
    %v567 = vadd.f32 0.0, %v566
    %v568 = vpop.f32.mrb[0].mxu0
    %v569 = vpop.f32.mrb[0].mxu0
    %v570 = vpop.f32.mrb[0].mxu0
    %571 = vdwg.mxu0
    %v572 = vadd.f32 %v158, %v567
    %v573 = vxor.u32 %v572, 2147483648
    %v574 = vmul.f32 %v573, 1.442695
    %v575 = vpow.pop %v574
    %v576 = vadd.f32 %v575, 1.0
    %v577 = vrcp.pop %v576
    %v578 = vmul.f32 1.0, %v577
    %v579 = vmul.f32 %v578, 2.0
    %v580 = vsub.f32 %v579, 1.0
    %v581 = vmul.f32 %v578, %v443
    %583 = vrot.lane.b32.xlu0 %v580, 64
    %v584 = vpop.permute.xlu0 %583
    %v586 = vmul.f32 %v578, %v584
    %588 = vrot.lane.b32.xlu0 %v586, 32
    %v589 = vpop.permute.xlu0 %588
    %v591 = vadd.f32 %v581, %v589
    %v592 = vtanh.pop %v591
    %594 = vrot.lane.b32.xlu0 %v592, 64
    %v595 = vpop.permute.xlu0 %594
    %v597 = vmul.f32 %v578, %v595
    %v598 = vpack.c.bf16 %v597, %v597
    %600 = vrot.lane.b32.xlu0 %v598, 32
    %v601 = vpop.permute.xlu0 %600
    %603 = vrot.lane.b32.xlu0 %v527, 64
    %v604 = vpop.permute.xlu0 %603
    %v607 = vsel %vm211, %v601, %v604
    %v608 = vsel %vm311, %v607, 0
    %610 = vmatprep.subr.bf16.mxu0 0
    %611 = vmatpush1.bf16.msra.mxu0 %v303
    %612 = vmatprep.subr.bf16.mxu0 0
    %613 = vmatpush1.bf16.msra.mxu0 %v304
    %614 = vmatprep.subr.bf16.mxu0 0
    %615 = vmatpush1.bf16.msra.mxu0 %v305
    %616 = vmatprep.subr.bf16.mxu0 0
    %617 = vmatpush1.bf16.msra.mxu0 %v306
    %618 = vmatprep.subr.bf16.mxu0 0
    %619 = vmatpush1.bf16.msra.mxu0 0
    %620 = vmatprep.subr.bf16.mxu0 0
    %621 = vmatpush1.bf16.msra.mxu0 0
    %622 = vmatprep.subr.bf16.mxu0 0
    %623 = vmatpush1.bf16.msra.mxu0 0
    %624 = vmatprep.subr.bf16.mxu0 0
    %625 = vmatpush1.bf16.msra.mxu0 0
    %626 = vmatprep.subr.bf16.mxu0 0
    %627 = vmatpush1.bf16.msra.mxu0 0
    %628 = vmatprep.subr.bf16.mxu0 0
    %629 = vmatpush1.bf16.msra.mxu0 0
    %630 = vmatprep.subr.bf16.mxu0 0
    %631 = vmatpush1.bf16.msra.mxu0 0
    %632 = vmatprep.subr.bf16.mxu0 0
    %633 = vmatpush1.bf16.msra.mxu0 0
    %634 = vmatprep.subr.bf16.mxu0 0
    %635 = vmatpush1.bf16.msra.mxu0 0
    %636 = vmatprep.subr.bf16.mxu0 0
    %637 = vmatpush1.bf16.msra.mxu0 0
    %638 = vmatprep.subr.bf16.mxu0 0
    %639 = vmatpush1.bf16.msra.mxu0 0
    %640 = vmatprep.subr.bf16.mxu0 0
    %641 = vmatpush1.bf16.msra.mxu0 0
    %642 = vmatprep.mubr.bf16.mxu0 0
    %643 = vmatmul.mubr.bf16.gmra.mrb[0].mxu0 %v608
    %v644 = vpop.f32.mrb[0].mxu0
    %v645 = vadd.f32 %v197, %v644
    %v646 = vpop.f32.mrb[0].mxu0
    %v647 = vpop.f32.mrb[0].mxu0
    %v648 = vpop.f32.mrb[0].mxu0
    %649 = vdwg.mxu0
    %v650 = vxor.u32 %v645, 2147483648
    %v651 = vmul.f32 %v650, 1.442695
    %v652 = vpow.pop %v651
    %v653 = vadd.f32 %v652, 1.0
    %v654 = vrcp.pop %v653
    %v655 = vmul.f32 1.0, %v654
    %v656 = vmul.f32 %v655, 2.0
    %v657 = vsub.f32 %v656, 1.0
    %v658 = vmul.f32 %v655, %v520
    %660 = vrot.lane.b32.xlu0 %v657, 64
    %v661 = vpop.permute.xlu0 %660
    %v663 = vmul.f32 %v655, %v661
    %665 = vrot.lane.b32.xlu0 %v663, 32
    %v666 = vpop.permute.xlu0 %665
    %v668 = vadd.f32 %v658, %v666
    %v669 = vtanh.pop %v668
    %671 = vrot.lane.b32.xlu0 %v669, 64
    %v672 = vpop.permute.xlu0 %671
    %v674 = vmul.f32 %v655, %v672
    %v675 = vpack.c.bf16 %v674, %v674
    %v676 = vmax.f32 %v674, 0.0
    %v677 = vpack.c.bf16 %v676, %v676
    %v678 = vsel %vm211, %v601, 0
    %680 = vmatprep.subr.bf16.mxu0 0
    %681 = vmatpush1.bf16.msra.mxu0 %v207
    %682 = vmatprep.subr.bf16.mxu0 0
    %683 = vmatpush1.bf16.msra.mxu0 %v208
    %684 = vmatprep.subr.bf16.mxu0 0
    %685 = vmatpush1.bf16.msra.mxu0 0
    %686 = vmatprep.subr.bf16.mxu0 0
    %687 = vmatpush1.bf16.msra.mxu0 0
    %688 = vmatprep.subr.bf16.mxu0 0
    %689 = vmatpush1.bf16.msra.mxu0 0
    %690 = vmatprep.subr.bf16.mxu0 0
    %691 = vmatpush1.bf16.msra.mxu0 0
    %692 = vmatprep.subr.bf16.mxu0 0
    %693 = vmatpush1.bf16.msra.mxu0 0
    %694 = vmatprep.subr.bf16.mxu0 0
    %695 = vmatpush1.bf16.msra.mxu0 0
    %696 = vmatprep.subr.bf16.mxu0 0
    %697 = vmatpush1.bf16.msra.mxu0 0
    %698 = vmatprep.subr.bf16.mxu0 0
    %699 = vmatpush1.bf16.msra.mxu0 0
    %700 = vmatprep.subr.bf16.mxu0 0
    %701 = vmatpush1.bf16.msra.mxu0 0
    %702 = vmatprep.subr.bf16.mxu0 0
    %703 = vmatpush1.bf16.msra.mxu0 0
    %704 = vmatprep.subr.bf16.mxu0 0
    %705 = vmatpush1.bf16.msra.mxu0 0
    %706 = vmatprep.subr.bf16.mxu0 0
    %707 = vmatpush1.bf16.msra.mxu0 0
    %708 = vmatprep.subr.bf16.mxu0 0
    %709 = vmatpush1.bf16.msra.mxu0 0
    %710 = vmatprep.subr.bf16.mxu0 0
    %711 = vmatpush1.bf16.msra.mxu0 0
    %712 = vmatprep.mubr.bf16.mxu0 0
    %713 = vmatmul.mubr.bf16.gmra.mrb[0].mxu0 %v678
    %v714 = vpop.f32.mrb[0].mxu0
    %v715 = vadd.f32 0.0, %v714
    %v716 = vpop.f32.mrb[0].mxu0
    %v717 = vpop.f32.mrb[0].mxu0
    %v718 = vpop.f32.mrb[0].mxu0
    %719 = vdwg.mxu0
    %v720 = vadd.f32 %v161, %v715
    %v721 = vxor.u32 %v720, 2147483648
    %v722 = vmul.f32 %v721, 1.442695
    %v723 = vpow.pop %v722
    %v724 = vadd.f32 %v723, 1.0
    %v725 = vrcp.pop %v724
    %v726 = vmul.f32 1.0, %v725
    %v727 = vmul.f32 %v726, 2.0
    %v728 = vsub.f32 %v727, 1.0
    %v729 = vmul.f32 %v726, %v591
    %731 = vrot.lane.b32.xlu0 %v728, 64
    %v732 = vpop.permute.xlu0 %731
    %v734 = vmul.f32 %v726, %v732
    %736 = vrot.lane.b32.xlu0 %v734, 32
    %v737 = vpop.permute.xlu0 %736
    %v739 = vadd.f32 %v729, %v737
    %v740 = vtanh.pop %v739
    %742 = vrot.lane.b32.xlu0 %v740, 64
    %v743 = vpop.permute.xlu0 %742
    %v745 = vmul.f32 %v726, %v743
    %v746 = vpack.c.bf16 %v745, %v745
    %748 = vrot.lane.b32.xlu0 %v746, 32
    %v749 = vpop.permute.xlu0 %748
    %751 = vrot.lane.b32.xlu0 %v675, 64
    %v752 = vpop.permute.xlu0 %751
    %v755 = vsel %vm211, %v749, %v752
    %v756 = vsel %vm311, %v755, 0
    %758 = vmatprep.subr.bf16.mxu0 0
    %759 = vmatpush1.bf16.msra.mxu0 %v303
    %760 = vmatprep.subr.bf16.mxu0 0
    %761 = vmatpush1.bf16.msra.mxu0 %v304
    %762 = vmatprep.subr.bf16.mxu0 0
    %763 = vmatpush1.bf16.msra.mxu0 %v305
    %764 = vmatprep.subr.bf16.mxu0 0
    %765 = vmatpush1.bf16.msra.mxu0 %v306
    %766 = vmatprep.subr.bf16.mxu0 0
    %767 = vmatpush1.bf16.msra.mxu0 0
    %768 = vmatprep.subr.bf16.mxu0 0
    %769 = vmatpush1.bf16.msra.mxu0 0
    %770 = vmatprep.subr.bf16.mxu0 0
    %771 = vmatpush1.bf16.msra.mxu0 0
    %772 = vmatprep.subr.bf16.mxu0 0
    %773 = vmatpush1.bf16.msra.mxu0 0
    %774 = vmatprep.subr.bf16.mxu0 0
    %775 = vmatpush1.bf16.msra.mxu0 0
    %776 = vmatprep.subr.bf16.mxu0 0
    %777 = vmatpush1.bf16.msra.mxu0 0
    %778 = vmatprep.subr.bf16.mxu0 0
    %779 = vmatpush1.bf16.msra.mxu0 0
    %780 = vmatprep.subr.bf16.mxu0 0
    %781 = vmatpush1.bf16.msra.mxu0 0
    %782 = vmatprep.subr.bf16.mxu0 0
    %783 = vmatpush1.bf16.msra.mxu0 0
    %784 = vmatprep.subr.bf16.mxu0 0
    %785 = vmatpush1.bf16.msra.mxu0 0
    %786 = vmatprep.subr.bf16.mxu0 0
    %787 = vmatpush1.bf16.msra.mxu0 0
    %788 = vmatprep.subr.bf16.mxu0 0
    %789 = vmatpush1.bf16.msra.mxu0 0
    %790 = vmatprep.mubr.bf16.mxu0 0
    %791 = vmatmul.mubr.bf16.gmra.mrb[0].mxu0 %v756
    %v792 = vpop.f32.mrb[0].mxu0
    %v793 = vadd.f32 %v197, %v792
    %v794 = vpop.f32.mrb[0].mxu0
    %v795 = vpop.f32.mrb[0].mxu0
    %v796 = vpop.f32.mrb[0].mxu0
    %797 = vdwg.mxu0
    %v798 = vxor.u32 %v793, 2147483648
    %v799 = vmul.f32 %v798, 1.442695
    %v800 = vpow.pop %v799
    %v801 = vadd.f32 %v800, 1.0
    %v802 = vrcp.pop %v801
    %v803 = vmul.f32 1.0, %v802
    %v804 = vmul.f32 %v803, 2.0
    %v805 = vsub.f32 %v804, 1.0
    %v806 = vmul.f32 %v803, %v668
    %808 = vrot.lane.b32.xlu0 %v805, 64
    %v809 = vpop.permute.xlu0 %808
    %v811 = vmul.f32 %v803, %v809
    %813 = vrot.lane.b32.xlu0 %v811, 32
    %v814 = vpop.permute.xlu0 %813
    %v816 = vadd.f32 %v806, %v814
    %v817 = vtanh.pop %v816
    %819 = vrot.lane.b32.xlu0 %v817, 64
    %v820 = vpop.permute.xlu0 %819
    %v822 = vmul.f32 %v803, %v820
    %v823 = vpack.c.bf16 %v822, %v822
    %v824 = vmax.f32 %v822, 0.0
    %v825 = vpack.c.bf16 %v824, %v824
    %v826 = vsel %vm211, %v749, 0
    %828 = vmatprep.subr.bf16.mxu0 0
    %829 = vmatpush1.bf16.msra.mxu0 %v207
    %830 = vmatprep.subr.bf16.mxu0 0
    %831 = vmatpush1.bf16.msra.mxu0 %v208
    %832 = vmatprep.subr.bf16.mxu0 0
    %833 = vmatpush1.bf16.msra.mxu0 0
    %834 = vmatprep.subr.bf16.mxu0 0
    %835 = vmatpush1.bf16.msra.mxu0 0
    %836 = vmatprep.subr.bf16.mxu0 0
    %837 = vmatpush1.bf16.msra.mxu0 0
    %838 = vmatprep.subr.bf16.mxu0 0
    %839 = vmatpush1.bf16.msra.mxu0 0
    %840 = vmatprep.subr.bf16.mxu0 0
    %841 = vmatpush1.bf16.msra.mxu0 0
    %842 = vmatprep.subr.bf16.mxu0 0
    %843 = vmatpush1.bf16.msra.mxu0 0
    %844 = vmatprep.subr.bf16.mxu0 0
    %845 = vmatpush1.bf16.msra.mxu0 0
    %846 = vmatprep.subr.bf16.mxu0 0
    %847 = vmatpush1.bf16.msra.mxu0 0
    %848 = vmatprep.subr.bf16.mxu0 0
    %849 = vmatpush1.bf16.msra.mxu0 0
    %850 = vmatprep.subr.bf16.mxu0 0
    %851 = vmatpush1.bf16.msra.mxu0 0
    %852 = vmatprep.subr.bf16.mxu0 0
    %853 = vmatpush1.bf16.msra.mxu0 0
    %854 = vmatprep.subr.bf16.mxu0 0
    %855 = vmatpush1.bf16.msra.mxu0 0
    %856 = vmatprep.subr.bf16.mxu0 0
    %857 = vmatpush1.bf16.msra.mxu0 0
    %858 = vmatprep.subr.bf16.mxu0 0
    %859 = vmatpush1.bf16.msra.mxu0 0
    %860 = vmatprep.mubr.bf16.mxu0 0
    %861 = vmatmul.mubr.bf16.gmra.mrb[0].mxu0 %v826
    %v862 = vpop.f32.mrb[0].mxu0
    %v863 = vadd.f32 0.0, %v862
    %v864 = vpop.f32.mrb[0].mxu0
    %v865 = vpop.f32.mrb[0].mxu0
    %v866 = vpop.f32.mrb[0].mxu0
    %867 = vdwg.mxu0
    %v868 = vadd.f32 %v166, %v863
    %v869 = vxor.u32 %v868, 2147483648
    %v870 = vmul.f32 %v869, 1.442695
    %v871 = vpow.pop %v870
    %v872 = vadd.f32 %v871, 1.0
    %v873 = vrcp.pop %v872
    %v874 = vmul.f32 1.0, %v873
    %v875 = vmul.f32 %v874, 2.0
    %v876 = vsub.f32 %v875, 1.0
    %v877 = vmul.f32 %v874, %v739
    %879 = vrot.lane.b32.xlu0 %v876, 64
    %v880 = vpop.permute.xlu0 %879
    %v882 = vmul.f32 %v874, %v880
    %884 = vrot.lane.b32.xlu0 %v882, 32
    %v885 = vpop.permute.xlu0 %884
    %v887 = vadd.f32 %v877, %v885
    %v888 = vtanh.pop %v887
    %890 = vrot.lane.b32.xlu0 %v888, 64
    %v891 = vpop.permute.xlu0 %890
    %v893 = vmul.f32 %v874, %v891
    %v894 = vpack.c.bf16 %v893, %v893
    %896 = vrot.lane.b32.xlu0 %v894, 32
    %v897 = vpop.permute.xlu0 %896
    %899 = vrot.lane.b32.xlu0 %v823, 64
    %v900 = vpop.permute.xlu0 %899
    %v903 = vsel %vm211, %v897, %v900
    %v904 = vsel %vm311, %v903, 0
    %906 = vmatprep.subr.bf16.mxu0 0
    %907 = vmatpush1.bf16.msra.mxu0 %v303
    %908 = vmatprep.subr.bf16.mxu0 0
    %909 = vmatpush1.bf16.msra.mxu0 %v304
    %910 = vmatprep.subr.bf16.mxu0 0
    %911 = vmatpush1.bf16.msra.mxu0 %v305
    %912 = vmatprep.subr.bf16.mxu0 0
    %913 = vmatpush1.bf16.msra.mxu0 %v306
    %914 = vmatprep.subr.bf16.mxu0 0
    %915 = vmatpush1.bf16.msra.mxu0 0
    %916 = vmatprep.subr.bf16.mxu0 0
    %917 = vmatpush1.bf16.msra.mxu0 0
    %918 = vmatprep.subr.bf16.mxu0 0
    %919 = vmatpush1.bf16.msra.mxu0 0
    %920 = vmatprep.subr.bf16.mxu0 0
    %921 = vmatpush1.bf16.msra.mxu0 0
    %922 = vmatprep.subr.bf16.mxu0 0
    %923 = vmatpush1.bf16.msra.mxu0 0
    %924 = vmatprep.subr.bf16.mxu0 0
    %925 = vmatpush1.bf16.msra.mxu0 0
    %926 = vmatprep.subr.bf16.mxu0 0
    %927 = vmatpush1.bf16.msra.mxu0 0
    %928 = vmatprep.subr.bf16.mxu0 0
    %929 = vmatpush1.bf16.msra.mxu0 0
    %930 = vmatprep.subr.bf16.mxu0 0
    %931 = vmatpush1.bf16.msra.mxu0 0
    %932 = vmatprep.subr.bf16.mxu0 0
    %933 = vmatpush1.bf16.msra.mxu0 0
    %934 = vmatprep.subr.bf16.mxu0 0
    %935 = vmatpush1.bf16.msra.mxu0 0
    %936 = vmatprep.subr.bf16.mxu0 0
    %937 = vmatpush1.bf16.msra.mxu0 0
    %938 = vmatprep.mubr.bf16.mxu0 0
    %939 = vmatmul.mubr.bf16.gmra.mrb[0].mxu0 %v904
    %v940 = vpop.f32.mrb[0].mxu0
    %v941 = vadd.f32 %v197, %v940
    %v942 = vpop.f32.mrb[0].mxu0
    %v943 = vpop.f32.mrb[0].mxu0
    %v944 = vpop.f32.mrb[0].mxu0
    %945 = vdwg.mxu0
    %v946 = vxor.u32 %v941, 2147483648
    %v947 = vmul.f32 %v946, 1.442695
    %v948 = vpow.pop %v947
    %v949 = vadd.f32 %v948, 1.0
    %v950 = vrcp.pop %v949
    %v951 = vmul.f32 1.0, %v950
    %v952 = vmul.f32 %v951, 2.0
    %v953 = vsub.f32 %v952, 1.0
    %v954 = vmul.f32 %v951, %v816
    %956 = vrot.lane.b32.xlu0 %v953, 64
    %v957 = vpop.permute.xlu0 %956
    %v959 = vmul.f32 %v951, %v957
    %961 = vrot.lane.b32.xlu0 %v959, 32
    %v962 = vpop.permute.xlu0 %961
    %v964 = vadd.f32 %v954, %v962
    %v965 = vtanh.pop %v964
    %967 = vrot.lane.b32.xlu0 %v965, 64
    %v968 = vpop.permute.xlu0 %967
    %v970 = vmul.f32 %v951, %v968
    %v971 = vpack.c.bf16 %v970, %v970
    %v972 = vmax.f32 %v970, 0.0
    %v973 = vpack.c.bf16 %v972, %v972
    %v974 = vsel %vm211, %v897, 0
    %976 = vmatprep.subr.bf16.mxu0 0
    %977 = vmatpush1.bf16.msra.mxu0 %v207
    %978 = vmatprep.subr.bf16.mxu0 0
    %979 = vmatpush1.bf16.msra.mxu0 %v208
    %980 = vmatprep.subr.bf16.mxu0 0
    %981 = vmatpush1.bf16.msra.mxu0 0
    %982 = vmatprep.subr.bf16.mxu0 0
    %983 = vmatpush1.bf16.msra.mxu0 0
    %984 = vmatprep.subr.bf16.mxu0 0
    %985 = vmatpush1.bf16.msra.mxu0 0
    %986 = vmatprep.subr.bf16.mxu0 0
    %987 = vmatpush1.bf16.msra.mxu0 0
    %988 = vmatprep.subr.bf16.mxu0 0
    %989 = vmatpush1.bf16.msra.mxu0 0
    %990 = vmatprep.subr.bf16.mxu0 0
    %991 = vmatpush1.bf16.msra.mxu0 0
    %992 = vmatprep.subr.bf16.mxu0 0
    %993 = vmatpush1.bf16.msra.mxu0 0
    %994 = vmatprep.subr.bf16.mxu0 0
    %995 = vmatpush1.bf16.msra.mxu0 0
    %996 = vmatprep.subr.bf16.mxu0 0
    %997 = vmatpush1.bf16.msra.mxu0 0
    %998 = vmatprep.subr.bf16.mxu0 0
    %999 = vmatpush1.bf16.msra.mxu0 0
    %1000 = vmatprep.subr.bf16.mxu0 0
    %1001 = vmatpush1.bf16.msra.mxu0 0
    %1002 = vmatprep.subr.bf16.mxu0 0
    %1003 = vmatpush1.bf16.msra.mxu0 0
    %1004 = vmatprep.subr.bf16.mxu0 0
    %1005 = vmatpush1.bf16.msra.mxu0 0
    %1006 = vmatprep.subr.bf16.mxu0 0
    %1007 = vmatpush1.bf16.msra.mxu0 0
    %1008 = vmatprep.mubr.bf16.mxu0 0
    %1009 = vmatmul.mubr.bf16.gmra.mrb[0].mxu0 %v974
    %v1010 = vpop.f32.mrb[0].mxu0
    %v1011 = vadd.f32 0.0, %v1010
    %v1012 = vpop.f32.mrb[0].mxu0
    %v1013 = vpop.f32.mrb[0].mxu0
    %v1014 = vpop.f32.mrb[0].mxu0
    %1015 = vdwg.mxu0
    %v1016 = vadd.f32 %v169, %v1011
    %v1017 = vxor.u32 %v1016, 2147483648
    %v1018 = vmul.f32 %v1017, 1.442695
    %v1019 = vpow.pop %v1018
    %v1020 = vadd.f32 %v1019, 1.0
    %v1021 = vrcp.pop %v1020
    %v1022 = vmul.f32 1.0, %v1021
    %v1023 = vmul.f32 %v1022, 2.0
    %v1024 = vsub.f32 %v1023, 1.0
    %v1025 = vmul.f32 %v1022, %v887
    %1027 = vrot.lane.b32.xlu0 %v1024, 64
    %v1028 = vpop.permute.xlu0 %1027
    %v1030 = vmul.f32 %v1022, %v1028
    %1032 = vrot.lane.b32.xlu0 %v1030, 32
    %v1033 = vpop.permute.xlu0 %1032
    %v1035 = vadd.f32 %v1025, %v1033
    %v1036 = vtanh.pop %v1035
    %1038 = vrot.lane.b32.xlu0 %v1036, 64
    %v1039 = vpop.permute.xlu0 %1038
    %v1041 = vmul.f32 %v1022, %v1039
    %v1042 = vpack.c.bf16 %v1041, %v1041
    %1044 = vrot.lane.b32.xlu0 %v1042, 32
    %v1045 = vpop.permute.xlu0 %1044
    %1047 = vrot.lane.b32.xlu0 %v971, 64
    %v1048 = vpop.permute.xlu0 %1047
    %v1051 = vsel %vm211, %v1045, %v1048
    %v1052 = vsel %vm311, %v1051, 0
    %1054 = vmatprep.subr.bf16.mxu0 0
    %1055 = vmatpush1.bf16.msra.mxu0 %v303
    %1056 = vmatprep.subr.bf16.mxu0 0
    %1057 = vmatpush1.bf16.msra.mxu0 %v304
    %1058 = vmatprep.subr.bf16.mxu0 0
    %1059 = vmatpush1.bf16.msra.mxu0 %v305
    %1060 = vmatprep.subr.bf16.mxu0 0
    %1061 = vmatpush1.bf16.msra.mxu0 %v306
    %1062 = vmatprep.subr.bf16.mxu0 0
    %1063 = vmatpush1.bf16.msra.mxu0 0
    %1064 = vmatprep.subr.bf16.mxu0 0
    %1065 = vmatpush1.bf16.msra.mxu0 0
    %1066 = vmatprep.subr.bf16.mxu0 0
    %1067 = vmatpush1.bf16.msra.mxu0 0
    %1068 = vmatprep.subr.bf16.mxu0 0
    %1069 = vmatpush1.bf16.msra.mxu0 0
    %1070 = vmatprep.subr.bf16.mxu0 0
    %1071 = vmatpush1.bf16.msra.mxu0 0
    %1072 = vmatprep.subr.bf16.mxu0 0
    %1073 = vmatpush1.bf16.msra.mxu0 0
    %1074 = vmatprep.subr.bf16.mxu0 0
    %1075 = vmatpush1.bf16.msra.mxu0 0
    %1076 = vmatprep.subr.bf16.mxu0 0
    %1077 = vmatpush1.bf16.msra.mxu0 0
    %1078 = vmatprep.subr.bf16.mxu0 0
    %1079 = vmatpush1.bf16.msra.mxu0 0
    %1080 = vmatprep.subr.bf16.mxu0 0
    %1081 = vmatpush1.bf16.msra.mxu0 0
    %1082 = vmatprep.subr.bf16.mxu0 0
    %1083 = vmatpush1.bf16.msra.mxu0 0
    %1084 = vmatprep.subr.bf16.mxu0 0
    %1085 = vmatpush1.bf16.msra.mxu0 0
    %1086 = vmatprep.mubr.bf16.mxu0 0
    %1087 = vmatmul.mubr.bf16.gmra.mrb[0].mxu0 %v1052
    %v1088 = vpop.f32.mrb[0].mxu0
    %v1089 = vadd.f32 %v197, %v1088
    %v1090 = vpop.f32.mrb[0].mxu0
    %v1091 = vpop.f32.mrb[0].mxu0
    %v1092 = vpop.f32.mrb[0].mxu0
    %1093 = vdwg.mxu0
    %v1094 = vxor.u32 %v1089, 2147483648
    %v1095 = vmul.f32 %v1094, 1.442695
    %v1096 = vpow.pop %v1095
    %v1097 = vadd.f32 %v1096, 1.0
    %v1098 = vrcp.pop %v1097
    %v1099 = vmul.f32 1.0, %v1098
    %v1100 = vmul.f32 %v1099, 2.0
    %v1101 = vsub.f32 %v1100, 1.0
    %v1102 = vmul.f32 %v1099, %v964
    %1104 = vrot.lane.b32.xlu0 %v1101, 64
    %v1105 = vpop.permute.xlu0 %1104
    %v1107 = vmul.f32 %v1099, %v1105
    %1109 = vrot.lane.b32.xlu0 %v1107, 32
    %v1110 = vpop.permute.xlu0 %1109
    %v1112 = vadd.f32 %v1102, %v1110
    %v1113 = vtanh.pop %v1112
    %1115 = vrot.lane.b32.xlu0 %v1113, 64
    %v1116 = vpop.permute.xlu0 %1115
    %v1118 = vmul.f32 %v1099, %v1116
    %v1119 = vpack.c.bf16 %v1118, %v1118
    %v1120 = vmax.f32 %v1118, 0.0
    %v1121 = vpack.c.bf16 %v1120, %v1120
    %v1122 = vsel %vm211, %v1045, 0
    %1124 = vmatprep.subr.bf16.mxu0 0
    %1125 = vmatpush1.bf16.msra.mxu0 %v207
    %1126 = vmatprep.subr.bf16.mxu0 0
    %1127 = vmatpush1.bf16.msra.mxu0 %v208
    %1128 = vmatprep.subr.bf16.mxu0 0
    %1129 = vmatpush1.bf16.msra.mxu0 0
    %1130 = vmatprep.subr.bf16.mxu0 0
    %1131 = vmatpush1.bf16.msra.mxu0 0
    %1132 = vmatprep.subr.bf16.mxu0 0
    %1133 = vmatpush1.bf16.msra.mxu0 0
    %1134 = vmatprep.subr.bf16.mxu0 0
    %1135 = vmatpush1.bf16.msra.mxu0 0
    %1136 = vmatprep.subr.bf16.mxu0 0
    %1137 = vmatpush1.bf16.msra.mxu0 0
    %1138 = vmatprep.subr.bf16.mxu0 0
    %1139 = vmatpush1.bf16.msra.mxu0 0
    %1140 = vmatprep.subr.bf16.mxu0 0
    %1141 = vmatpush1.bf16.msra.mxu0 0
    %1142 = vmatprep.subr.bf16.mxu0 0
    %1143 = vmatpush1.bf16.msra.mxu0 0
    %1144 = vmatprep.subr.bf16.mxu0 0
    %1145 = vmatpush1.bf16.msra.mxu0 0
    %1146 = vmatprep.subr.bf16.mxu0 0
    %1147 = vmatpush1.bf16.msra.mxu0 0
    %1148 = vmatprep.subr.bf16.mxu0 0
    %1149 = vmatpush1.bf16.msra.mxu0 0
    %1150 = vmatprep.subr.bf16.mxu0 0
    %1151 = vmatpush1.bf16.msra.mxu0 0
    %1152 = vmatprep.subr.bf16.mxu0 0
    %1153 = vmatpush1.bf16.msra.mxu0 0
    %1154 = vmatprep.subr.bf16.mxu0 0
    %1155 = vmatpush1.bf16.msra.mxu0 0
    %1156 = vmatprep.mubr.bf16.mxu0 0
    %1157 = vmatmul.mubr.bf16.gmra.mrb[0].mxu0 %v1122
    %v1158 = vpop.f32.mrb[0].mxu0
    %v1159 = vadd.f32 0.0, %v1158
    %v1160 = vpop.f32.mrb[0].mxu0
    %v1161 = vpop.f32.mrb[0].mxu0
    %v1162 = vpop.f32.mrb[0].mxu0
    %1163 = vdwg.mxu0
    %v1164 = vadd.f32 %v174, %v1159
    %v1165 = vxor.u32 %v1164, 2147483648
    %v1166 = vmul.f32 %v1165, 1.442695
    %v1167 = vpow.pop %v1166
    %v1168 = vadd.f32 %v1167, 1.0
    %v1169 = vrcp.pop %v1168
    %v1170 = vmul.f32 1.0, %v1169
    %v1171 = vmul.f32 %v1170, 2.0
    %v1172 = vsub.f32 %v1171, 1.0
    %v1173 = vmul.f32 %v1170, %v1035
    %1175 = vrot.lane.b32.xlu0 %v1172, 64
    %v1176 = vpop.permute.xlu0 %1175
    %v1178 = vmul.f32 %v1170, %v1176
    %1180 = vrot.lane.b32.xlu0 %v1178, 32
    %v1181 = vpop.permute.xlu0 %1180
    %v1183 = vadd.f32 %v1173, %v1181
    %v1184 = vtanh.pop %v1183
    %1186 = vrot.lane.b32.xlu0 %v1184, 64
    %v1187 = vpop.permute.xlu0 %1186
    %v1189 = vmul.f32 %v1170, %v1187
    %v1190 = vpack.c.bf16 %v1189, %v1189
    %1192 = vrot.lane.b32.xlu0 %v1190, 32
    %v1193 = vpop.permute.xlu0 %1192
    %1195 = vrot.lane.b32.xlu0 %v1119, 64
    %v1196 = vpop.permute.xlu0 %1195
    %v1199 = vsel %vm211, %v1193, %v1196
    %v1200 = vsel %vm311, %v1199, 0
    %1202 = vmatprep.subr.bf16.mxu0 0
    %1203 = vmatpush1.bf16.msra.mxu0 %v303
    %1204 = vmatprep.subr.bf16.mxu0 0
    %1205 = vmatpush1.bf16.msra.mxu0 %v304
    %1206 = vmatprep.subr.bf16.mxu0 0
    %1207 = vmatpush1.bf16.msra.mxu0 %v305
    %1208 = vmatprep.subr.bf16.mxu0 0
    %1209 = vmatpush1.bf16.msra.mxu0 %v306
    %1210 = vmatprep.subr.bf16.mxu0 0
    %1211 = vmatpush1.bf16.msra.mxu0 0
    %1212 = vmatprep.subr.bf16.mxu0 0
    %1213 = vmatpush1.bf16.msra.mxu0 0
    %1214 = vmatprep.subr.bf16.mxu0 0
    %1215 = vmatpush1.bf16.msra.mxu0 0
    %1216 = vmatprep.subr.bf16.mxu0 0
    %1217 = vmatpush1.bf16.msra.mxu0 0
    %1218 = vmatprep.subr.bf16.mxu0 0
    %1219 = vmatpush1.bf16.msra.mxu0 0
    %1220 = vmatprep.subr.bf16.mxu0 0
    %1221 = vmatpush1.bf16.msra.mxu0 0
    %1222 = vmatprep.subr.bf16.mxu0 0
    %1223 = vmatpush1.bf16.msra.mxu0 0
    %1224 = vmatprep.subr.bf16.mxu0 0
    %1225 = vmatpush1.bf16.msra.mxu0 0
    %1226 = vmatprep.subr.bf16.mxu0 0
    %1227 = vmatpush1.bf16.msra.mxu0 0
    %1228 = vmatprep.subr.bf16.mxu0 0
    %1229 = vmatpush1.bf16.msra.mxu0 0
    %1230 = vmatprep.subr.bf16.mxu0 0
    %1231 = vmatpush1.bf16.msra.mxu0 0
    %1232 = vmatprep.subr.bf16.mxu0 0
    %1233 = vmatpush1.bf16.msra.mxu0 0
    %1234 = vmatprep.mubr.bf16.mxu0 0
    %1235 = vmatmul.mubr.bf16.gmra.mrb[0].mxu0 %v1200
    %v1236 = vpop.f32.mrb[0].mxu0
    %v1237 = vadd.f32 %v197, %v1236
    %v1238 = vpop.f32.mrb[0].mxu0
    %v1239 = vpop.f32.mrb[0].mxu0
    %v1240 = vpop.f32.mrb[0].mxu0
    %1241 = vdwg.mxu0
    %v1242 = vxor.u32 %v1237, 2147483648
    %v1243 = vmul.f32 %v1242, 1.442695
    %v1244 = vpow.pop %v1243
    %v1245 = vadd.f32 %v1244, 1.0
    %v1246 = vrcp.pop %v1245
    %v1247 = vmul.f32 1.0, %v1246
    %v1248 = vmul.f32 %v1247, 2.0
    %v1249 = vsub.f32 %v1248, 1.0
    %v1250 = vmul.f32 %v1247, %v1112
    %1252 = vrot.lane.b32.xlu0 %v1249, 64
    %v1253 = vpop.permute.xlu0 %1252
    %v1255 = vmul.f32 %v1247, %v1253
    %1257 = vrot.lane.b32.xlu0 %v1255, 32
    %v1258 = vpop.permute.xlu0 %1257
    %v1260 = vadd.f32 %v1250, %v1258
    %v1261 = vtanh.pop %v1260
    %1263 = vrot.lane.b32.xlu0 %v1261, 64
    %v1264 = vpop.permute.xlu0 %1263
    %v1266 = vmul.f32 %v1247, %v1264
    %v1267 = vpack.c.bf16 %v1266, %v1266
    %v1268 = vmax.f32 %v1266, 0.0
    %v1269 = vpack.c.bf16 %v1268, %v1268
    %v1270 = vsel %vm211, %v1193, 0
    %1272 = vmatprep.subr.bf16.mxu0 0
    %1273 = vmatpush1.bf16.msra.mxu0 %v207
    %1274 = vmatprep.subr.bf16.mxu0 0
    %1275 = vmatpush1.bf16.msra.mxu0 %v208
    %1276 = vmatprep.subr.bf16.mxu0 0
    %1277 = vmatpush1.bf16.msra.mxu0 0
    %1278 = vmatprep.subr.bf16.mxu0 0
    %1279 = vmatpush1.bf16.msra.mxu0 0
    %1280 = vmatprep.subr.bf16.mxu0 0
    %1281 = vmatpush1.bf16.msra.mxu0 0
    %1282 = vmatprep.subr.bf16.mxu0 0
    %1283 = vmatpush1.bf16.msra.mxu0 0
    %1284 = vmatprep.subr.bf16.mxu0 0
    %1285 = vmatpush1.bf16.msra.mxu0 0
    %1286 = vmatprep.subr.bf16.mxu0 0
    %1287 = vmatpush1.bf16.msra.mxu0 0
    %1288 = vmatprep.subr.bf16.mxu0 0
    %1289 = vmatpush1.bf16.msra.mxu0 0
    %1290 = vmatprep.subr.bf16.mxu0 0
    %1291 = vmatpush1.bf16.msra.mxu0 0
    %1292 = vmatprep.subr.bf16.mxu0 0
    %1293 = vmatpush1.bf16.msra.mxu0 0
    %1294 = vmatprep.subr.bf16.mxu0 0
    %1295 = vmatpush1.bf16.msra.mxu0 0
    %1296 = vmatprep.subr.bf16.mxu0 0
    %1297 = vmatpush1.bf16.msra.mxu0 0
    %1298 = vmatprep.subr.bf16.mxu0 0
    %1299 = vmatpush1.bf16.msra.mxu0 0
    %1300 = vmatprep.subr.bf16.mxu0 0
    %1301 = vmatpush1.bf16.msra.mxu0 0
    %1302 = vmatprep.subr.bf16.mxu0 0
    %1303 = vmatpush1.bf16.msra.mxu0 0
    %1304 = vmatprep.mubr.bf16.mxu0 0
    %1305 = vmatmul.mubr.bf16.gmra.mrb[0].mxu0 %v1270
    %v1306 = vpop.f32.mrb[0].mxu0
    %v1307 = vadd.f32 0.0, %v1306
    %v1308 = vpop.f32.mrb[0].mxu0
    %v1309 = vpop.f32.mrb[0].mxu0
    %v1310 = vpop.f32.mrb[0].mxu0
    %1311 = vdwg.mxu0
    %v1312 = vadd.f32 %v177, %v1307
    %v1313 = vxor.u32 %v1312, 2147483648
    %v1314 = vmul.f32 %v1313, 1.442695
    %v1315 = vpow.pop %v1314
    %v1316 = vadd.f32 %v1315, 1.0
    %v1317 = vrcp.pop %v1316
    %v1318 = vmul.f32 1.0, %v1317
    %v1319 = vmul.f32 %v1318, 2.0
    %v1320 = vsub.f32 %v1319, 1.0
    %v1321 = vmul.f32 %v1318, %v1183
    %1323 = vrot.lane.b32.xlu0 %v1320, 64
    %v1324 = vpop.permute.xlu0 %1323
    %v1326 = vmul.f32 %v1318, %v1324
    %1328 = vrot.lane.b32.xlu0 %v1326, 32
    %v1329 = vpop.permute.xlu0 %1328
    %v1331 = vadd.f32 %v1321, %v1329
    %v1332 = vtanh.pop %v1331
    %1334 = vrot.lane.b32.xlu0 %v1332, 64
    %v1335 = vpop.permute.xlu0 %1334
    %v1337 = vmul.f32 %v1318, %v1335
    %v1338 = vpack.c.bf16 %v1337, %v1337
    %1340 = vrot.lane.b32.xlu0 %v1338, 32
    %v1341 = vpop.permute.xlu0 %1340
    %1343 = vrot.lane.b32.xlu0 %v1267, 64
    %v1344 = vpop.permute.xlu0 %1343
    %v1347 = vsel %vm211, %v1341, %v1344
    %v1348 = vsel %vm311, %v1347, 0
    %1350 = vmatprep.subr.bf16.mxu0 0
    %1351 = vmatpush1.bf16.msra.mxu0 %v303
    %1352 = vmatprep.subr.bf16.mxu0 0
    %1353 = vmatpush1.bf16.msra.mxu0 %v304
    %1354 = vmatprep.subr.bf16.mxu0 0
    %1355 = vmatpush1.bf16.msra.mxu0 %v305
    %1356 = vmatprep.subr.bf16.mxu0 0
    %1357 = vmatpush1.bf16.msra.mxu0 %v306
    %1358 = vmatprep.subr.bf16.mxu0 0
    %1359 = vmatpush1.bf16.msra.mxu0 0
    %1360 = vmatprep.subr.bf16.mxu0 0
    %1361 = vmatpush1.bf16.msra.mxu0 0
    %1362 = vmatprep.subr.bf16.mxu0 0
    %1363 = vmatpush1.bf16.msra.mxu0 0
    %1364 = vmatprep.subr.bf16.mxu0 0
    %1365 = vmatpush1.bf16.msra.mxu0 0
    %1366 = vmatprep.subr.bf16.mxu0 0
    %1367 = vmatpush1.bf16.msra.mxu0 0
    %1368 = vmatprep.subr.bf16.mxu0 0
    %1369 = vmatpush1.bf16.msra.mxu0 0
    %1370 = vmatprep.subr.bf16.mxu0 0
    %1371 = vmatpush1.bf16.msra.mxu0 0
    %1372 = vmatprep.subr.bf16.mxu0 0
    %1373 = vmatpush1.bf16.msra.mxu0 0
    %1374 = vmatprep.subr.bf16.mxu0 0
    %1375 = vmatpush1.bf16.msra.mxu0 0
    %1376 = vmatprep.subr.bf16.mxu0 0
    %1377 = vmatpush1.bf16.msra.mxu0 0
    %1378 = vmatprep.subr.bf16.mxu0 0
    %1379 = vmatpush1.bf16.msra.mxu0 0
    %1380 = vmatprep.subr.bf16.mxu0 0
    %1381 = vmatpush1.bf16.msra.mxu0 0
    %1382 = vmatprep.mubr.bf16.mxu0 0
    %1383 = vmatmul.mubr.bf16.gmra.mrb[0].mxu0 %v1348
    %v1384 = vpop.f32.mrb[0].mxu0
    %v1385 = vadd.f32 %v197, %v1384
    %v1386 = vpop.f32.mrb[0].mxu0
    %v1387 = vpop.f32.mrb[0].mxu0
    %v1388 = vpop.f32.mrb[0].mxu0
    %1389 = vdwg.mxu0
    %v1390 = vxor.u32 %v1385, 2147483648
    %v1391 = vmul.f32 %v1390, 1.442695
    %v1392 = vpow.pop %v1391
    %v1393 = vadd.f32 %v1392, 1.0
    %v1394 = vrcp.pop %v1393
    %v1395 = vmul.f32 1.0, %v1394
    %v1396 = vmul.f32 %v1395, 2.0
    %v1397 = vsub.f32 %v1396, 1.0
    %v1398 = vmul.f32 %v1395, %v1260
    %1400 = vrot.lane.b32.xlu0 %v1397, 64
    %v1401 = vpop.permute.xlu0 %1400
    %v1403 = vmul.f32 %v1395, %v1401
    %1405 = vrot.lane.b32.xlu0 %v1403, 32
    %v1406 = vpop.permute.xlu0 %1405
    %v1408 = vadd.f32 %v1398, %v1406
    %v1409 = vtanh.pop %v1408
    %1411 = vrot.lane.b32.xlu0 %v1409, 64
    %v1412 = vpop.permute.xlu0 %1411
    %v1414 = vmul.f32 %v1395, %v1412
    %v1415 = vmax.f32 %v1414, 0.0
    %v1416 = vpack.c.bf16 %v1415, %v1415
    %v1418 = vrot.slane %v529, 4
    %v1420 = vrot.slane %v825, 4
    %v1422 = vrot.slane %v1121, 4
    %v1424 = vrot.slane %v1416, 4
    %vm1425 = vcmask 1043456
    %v1428 = vsel %vm1425, %v381, %v1418
    %v1431 = vsel %vm1425, %v677, %v1420
    %v1434 = vsel %vm1425, %v973, %v1422
    %v1437 = vsel %vm1425, %v1269, %v1424
    %v1438 = vld [vmem:[#allocation5] sm:$0xf]
    %v1439 = vld [vmem:[#allocation5 + $0x4] sm:$0xf]
    %v1440 = vld [vmem:[#allocation5 + $0x8] sm:$0xf]
    %v1441 = vld [vmem:[#allocation5 + $0xc] sm:$0xf]
    %v1442 = vld [vmem:[%s7] sm:$0x1]
    %v1444 = vlaneseq
    %v1445 = vshrl.u32 %v1444, 7
    %v1446 = vsub.s32 0, %v1445
    %v1447 = vrot.slane %v1442, %v1446
    %1453 = vrot.lane.b32.xlu0 %v1428, 32
    %v1454 = vpop.permute.xlu0 %1453
    %1455 = vrot.lane.b32.xlu0 %v1431, 32
    %v1456 = vpop.permute.xlu0 %1455
    %1457 = vrot.lane.b32.xlu0 %v1434, 32
    %v1458 = vpop.permute.xlu0 %1457
    %1459 = vrot.lane.b32.xlu0 %v1437, 32
    %v1460 = vpop.permute.xlu0 %1459
    %v1465 = vunpack.c.l.b16 %v1438
    %v1466 = vunpack.c.l.b16 %v1439
    %v1467 = vunpack.c.l.b16 %v1440
    %v1468 = vunpack.c.l.b16 %v1441
    %v1469 = vpack.c.b16 %v1466, %v1465
    %v1470 = vpack.c.b16 %v1468, %v1467
    %v1474 = vsel %vm211, %v1454, 0
    %v1477 = vsel %vm211, %v1456, 0
    %v1480 = vsel %vm211, %v1458, 0
    %v1483 = vsel %vm211, %v1460, 0
    %1485 = vmatprep.subr.bf16.mxu0 0
    %1486 = vmatpush1.bf16.msra.mxu0 %v1469
    %1487 = vmatprep.subr.bf16.mxu0 0
    %1488 = vmatpush1.bf16.msra.mxu0 %v1470
    %1489 = vmatprep.subr.bf16.mxu0 0
    %1490 = vmatpush1.bf16.msra.mxu0 0
    %1491 = vmatprep.subr.bf16.mxu0 0
    %1492 = vmatpush1.bf16.msra.mxu0 0
    %1493 = vmatprep.subr.bf16.mxu0 0
    %1494 = vmatpush1.bf16.msra.mxu0 0
    %1495 = vmatprep.subr.bf16.mxu0 0
    %1496 = vmatpush1.bf16.msra.mxu0 0
    %1497 = vmatprep.subr.bf16.mxu0 0
    %1498 = vmatpush1.bf16.msra.mxu0 0
    %1499 = vmatprep.subr.bf16.mxu0 0
    %1500 = vmatpush1.bf16.msra.mxu0 0
    %1501 = vmatprep.subr.bf16.mxu0 0
    %1502 = vmatpush1.bf16.msra.mxu0 0
    %1503 = vmatprep.subr.bf16.mxu0 0
    %1504 = vmatpush1.bf16.msra.mxu0 0
    %1505 = vmatprep.subr.bf16.mxu0 0
    %1506 = vmatpush1.bf16.msra.mxu0 0
    %1507 = vmatprep.subr.bf16.mxu0 0
    %1508 = vmatpush1.bf16.msra.mxu0 0
    %1509 = vmatprep.subr.bf16.mxu0 0
    %1510 = vmatpush1.bf16.msra.mxu0 0
    %1511 = vmatprep.subr.bf16.mxu0 0
    %1512 = vmatpush1.bf16.msra.mxu0 0
    %1513 = vmatprep.subr.bf16.mxu0 0
    %1514 = vmatpush1.bf16.msra.mxu0 0
    %1515 = vmatprep.subr.bf16.mxu0 0
    %1516 = vmatpush1.bf16.msra.mxu0 0
    %1517 = vmatprep.mubr.bf16.mxu0 0
    %1518 = vmatmul.mubr.bf16.gmra.mrb[0].mxu0 %v1474
    %v1519 = vpop.f32.mrb[0].mxu0
    %v1520 = vadd.f32 %v1447, %v1519
    %v1521 = vpop.f32.mrb[0].mxu0
    %v1522 = vpop.f32.mrb[0].mxu0
    %v1523 = vadd.f32 %v1447, %v1522
    %v1524 = vpop.f32.mrb[0].mxu0
    %1525 = vmatprep.mubr.bf16.mxu0 0
    %1526 = vmatmul.mubr.bf16.gmra.mrb[0].mxu0 %v1477
    %v1527 = vpop.f32.mrb[0].mxu0
    %v1528 = vadd.f32 %v1447, %v1527
    %v1529 = vpop.f32.mrb[0].mxu0
    %v1530 = vpop.f32.mrb[0].mxu0
    %v1531 = vadd.f32 %v1447, %v1530
    %v1532 = vpop.f32.mrb[0].mxu0
    %1533 = vmatprep.mubr.bf16.mxu0 0
    %1534 = vmatmul.mubr.bf16.gmra.mrb[0].mxu0 %v1480
    %v1535 = vpop.f32.mrb[0].mxu0
    %v1536 = vadd.f32 %v1447, %v1535
    %v1537 = vpop.f32.mrb[0].mxu0
    %v1538 = vpop.f32.mrb[0].mxu0
    %v1539 = vadd.f32 %v1447, %v1538
    %v1540 = vpop.f32.mrb[0].mxu0
    %1541 = vmatprep.mubr.bf16.mxu0 0
    %1542 = vmatmul.mubr.bf16.gmra.mrb[0].mxu0 %v1483
    %v1543 = vpop.f32.mrb[0].mxu0
    %v1544 = vadd.f32 %v1447, %v1543
    %v1545 = vpop.f32.mrb[0].mxu0
    %v1546 = vpop.f32.mrb[0].mxu0
    %v1547 = vadd.f32 %v1447, %v1546
    %v1548 = vpop.f32.mrb[0].mxu0
    %1549 = vdwg.mxu0
    %v1550 = vpack.c.bf16 %v1523, %v1520
    %v1551 = vpack.c.bf16 %v1531, %v1528
    %v1552 = vpack.c.bf16 %v1539, %v1536
    %v1553 = vpack.c.bf16 %v1547, %v1544
    %v1558 = vunpack.c.l.b16 %v1550
    %v1559 = vunpack.c.h.b16 %v1550
    %v1560 = vunpack.c.l.b16 %v1551
    %v1561 = vunpack.c.h.b16 %v1551
    %v1562 = vunpack.c.l.b16 %v1552
    %v1563 = vunpack.c.h.b16 %v1552
    %v1564 = vunpack.c.l.b16 %v1553
    %v1565 = vunpack.c.h.b16 %v1553
    %v1566 = vpack.c.b16 %v1558, %v1558
    %v1567 = vpack.c.b16 %v1559, %v1559
    %v1568 = vpack.c.b16 %v1560, %v1560
    %v1569 = vpack.c.b16 %v1561, %v1561
    %v1570 = vpack.c.b16 %v1562, %v1562
    %v1571 = vpack.c.b16 %v1563, %v1563
    %v1572 = vpack.c.b16 %v1564, %v1564
    %v1573 = vpack.c.b16 %v1565, %v1565
    %1582 = vst [vmem:[#allocation7] sm:$0xf] %v1566
    %1583 = vst [vmem:[#allocation7 + $0x4] sm:$0xf] %v1567
    %1584 = vst [vmem:[#allocation7 + $0x8] sm:$0xf] %v1568
    %1585 = vst [vmem:[#allocation7 + $0xc] sm:$0xf] %v1569
    %1586 = vst [vmem:[#allocation7 + $0x10] sm:$0xf] %v1570
    %1587 = vst [vmem:[#allocation7 + $0x14] sm:$0xf] %v1571
    %1588 = vst [vmem:[#allocation7 + $0x18] sm:$0xf] %v1572
    %1589 = vst [vmem:[#allocation7 + $0x1c] sm:$0xf] %v1573
    // Predicated region
    $region42: #{tpu_custom_call.1} parent=1 // pred_check
      _
    $region43: #{tpu_custom_call.1} parent=1 // pred_check_branch
      %1591 = sbr.rel (0) target = $region45
    $region44: #{tpu_custom_call.1} parent=1 // pred_region
      %s1593 = ssub.s32 512, 512
      %1594 = vsyncadd [#allocation4], %s1593
      %s1595 = sshll.u32 [#allocation7], 4
      %s1596 = int_to_ptr.vmem [resolvable:$true] %s1595
      %1601 = dma.vmem_to_hbm [thread:$0]  %s1596, 512, %s8, [#allocation4], 64, 64, 4
    $region45: #{tpu_custom_call.1} parent=1 // pred_fallthru
      _
    // Predicated region
    $region46: #{tpu_custom_call.1} parent=1 // pred_check
      _
    $region47: #{tpu_custom_call.1} parent=1 // pred_check_branch
      %1603 = sbr.rel (0) target = $region49
    $region48: #{tpu_custom_call.1} parent=1 // pred_region
      %1604 = dma.done [#allocation4], 512
    $region49: #{tpu_custom_call.1} parent=1 // pred_fallthru
      _
    %1605 = vsyncpa [#allocation3], 1
    %1606 = vsyncpa [#allocation6], 1
    %1607 = vsyncpa [#allocation4], 1

</llo_original>
